<compile_context>
chip_gen: v7x
topology: tpu7x:2x2x1
jax: 0.10.0
libtpu: 0.0.40
codegen_flags: <defaults>
</compile_context>

<pallas_src>
import functools

import jax
import jax.numpy as jnp
from jax.experimental import pallas as pl
from jax.experimental.pallas import tpu as pltpu


def _round_up(x, m):
    return ((x + m - 1) // m) * m


# ---------------------------------------------------------------------------
# NeRF-style positional embedding of view directions (f32 reference path only;
# the Pallas kernel computes the same sin/cos expansion internally).
# ---------------------------------------------------------------------------
def embed_view(v, multires):
    outs = [v]
    for k in range(multires):
        f = float(2 ** k)
        outs.append(jnp.sin(v * f))
        outs.append(jnp.cos(v * f))
    return jnp.concatenate(outs, axis=-1)


# ---------------------------------------------------------------------------
# Shared math: used by the Pallas kernel (on loaded VMEM values / refs) and by
# the bf16-quantized JAX reference (on plain arrays), so both match exactly.
# ---------------------------------------------------------------------------
def _mlp_math(xs, w0_segs, w0_sc, b0, hidden, *, vd_idx, multires, squeeze_out):
    """xs      : list of (d_i, T) bf16 activations (feature-major layout).
       w0_segs : list of (H, d_i) bf16 layer-0 weight slices, one per input.
       w0_sc   : (2*multires, H, 3) bf16 sin/cos layer-0 slices (Ref or array).
       b0      : (H, 1) f32.   hidden: [((d_o, d_i) bf16, (d_o, 1) f32), ...]
       Returns (d_last, T) f32."""
    f32, bf16 = jnp.float32, jnp.bfloat16
    h = jnp.dot(w0_segs[0], xs[0], preferred_element_type=f32)
    for k in range(1, len(xs)):
        h = h + jnp.dot(w0_segs[k], xs[k], preferred_element_type=f32)
    if multires > 0:
        v = xs[vd_idx].astype(f32)              # trig in f32 (v5e EUP has no bf16)
        for k in range(multires):
            freq = float(2 ** k)
            s = jnp.sin(v * freq).astype(bf16)  # lane-dense (3, T): cheap EUP work
            c = jnp.cos(v * freq).astype(bf16)
            h = h + jnp.dot(w0_sc[2 * k], s, preferred_element_type=f32)
            h = h + jnp.dot(w0_sc[2 * k + 1], c, preferred_element_type=f32)
    h = h + b0
    if hidden:
        h = jnp.maximum(h, 0.0)
    for l, (w, b) in enumerate(hidden):
        h = jnp.dot(w, h.astype(bf16), preferred_element_type=f32) + b
        if l < len(hidden) - 1:
            h = jnp.maximum(h, 0.0)
    if squeeze_out:
        h = jax.nn.sigmoid(h)
    return h


# ---------------------------------------------------------------------------
# Pallas kernel
# ---------------------------------------------------------------------------
def _color_mlp_kernel(*refs, n_inputs, vd_idx, multires, squeeze_out):
    in_refs = refs[:n_inputs]
    o_ref = refs[-1]
    wrefs = refs[n_inputs:-1]

    xs = [r[...] for r in in_refs]                       # bf16 (d_i, tile_n)
    idx = n_inputs
    w0_segs = [wrefs[k][...] for k in range(n_inputs)]   # bf16 (H, d_i)
    if multires > 0:
        w0_sc = wrefs[idx]                               # keep as Ref; indexed per freq
        idx += 1
    else:
        w0_sc = None
    b0 = wrefs[idx][...]                                 # f32 (H, 1)
    idx += 1
    rest = wrefs[idx:]
    hidden = [(rest[2 * l][...], rest[2 * l + 1][...])
              for l in range(len(rest) // 2)]

    h = _mlp_math(xs, w0_segs, w0_sc, b0, hidden, vd_idx=vd_idx,
                  multires=multires, squeeze_out=squeeze_out)
    o_ref[...] = h.astype(o_ref.dtype)                   # lane-dense (d_out, tile_n)


def _full_spec(a):
    if a.ndim == 2:
        return pl.BlockSpec(a.shape, lambda i: (0, 0))
    assert a.ndim == 3
    return pl.BlockSpec(a.shape, lambda i: (0, 0, 0))


def color_mlp_pallas(inputs, w0_segs, w0_sc, b0, hidden, *, vd_idx, multires,
                     squeeze_out, tile_n=2048):
    """inputs: list of (N, d_i) f32 arrays (row-major).  Returns (N, d_out) f32."""
    N = inputs[0].shape[0]
    d_out = hidden[-1][0].shape[0] if hidden else b0.shape[0]

    # Feature-major layout + bf16 cast: halves the dominant HBM stream and makes
    # every in-kernel tile lane-dense.
    xts = [x.T.astype(jnp.bfloat16) for x in inputs]

    # Big lane-aligned tiles (amortize ~0.35us/step overhead) but keep >=2 grid
    # steps so both v7x TensorCores get work via the "parallel" axis.
    tile_n = max(128, min(int(tile_n), _round_up(pl.cdiv(N, 2), 128)))
    n_pad = _round_up(N, tile_n)
    if n_pad != N:
        xts = [jnp.pad(x, ((0, 0), (0, n_pad - N))) for x in xts]
    grid = (n_pad // tile_n,)

    operands, in_specs = [], []
    for xt in xts:
        operands.append(xt)
        in_specs.append(pl.BlockSpec((xt.shape[0], tile_n), lambda i: (0, i)))
    weights = list(w0_segs) + ([w0_sc] if multires > 0 else []) + [b0]
    for w, b in hidden:
        weights += [w, b]
    for w in weights:
        operands.append(w)
        in_specs.append(_full_spec(w))
    out_spec = pl.BlockSpec((d_out, tile_n), lambda i: (0, i))

    # Advisory cost hint for the XLA scheduler around this small custom call.
    d0_full = sum(int(w.shape[1]) for w in w0_segs) + 6 * multires
    H = int(b0.shape[0])
    mac = d0_full * H + sum(int(w.shape[0]) * int(w.shape[1]) for w, _ in hidden)
    cost = pl.CostEstimate(
        flops=int(2 * n_pad * mac),
        transcendentals=int(n_pad * (6 * multires + (d_out if squeeze_out else 0))),
        bytes_accessed=int(n_pad * (sum(int(x.shape[0]) for x in xts) * 2 + d_out * 4)
                           + sum(int(w.size) * w.dtype.itemsize for w in weights)))

    kernel = functools.partial(_color_mlp_kernel, n_inputs=len(xts),
                               vd_idx=vd_idx, multires=multires,
                               squeeze_out=squeeze_out)
    out_t = pl.pallas_call(
        kernel,
        out_shape=jax.ShapeDtypeStruct((d_out, n_pad), jnp.float32),
        grid_spec=pltpu.PrefetchScalarGridSpec(
            num_scalar_prefetch=0, grid=grid,
            in_specs=in_specs, out_specs=out_spec),
        compiler_params=pltpu.CompilerParams(
            dimension_semantics=("parallel",)),
        cost_estimate=cost,
    )(*operands)
    return out_t[:, :N].T


# ---------------------------------------------------------------------------
# RenderingNetwork wrapper
# ---------------------------------------------------------------------------
class RenderingNetworkPallas:
    def __init__(self, d_feature, mode, d_in, d_out, d_hidden, n_layers,
                 weight_norm=True, multires_view=0, squeeze_out=True, key=None):
        self.mode = mode
        self.squeeze_out = squeeze_out
        self.d_out = d_out
        self.use_embed = (mode in ("idr", "no_normal")) and multires_view > 0
        self.multires = multires_view if self.use_embed else 0

        dims = [d_in + d_feature] + [d_hidden] * n_layers + [d_out]
        if self.use_embed:
            dims[0] += 6 * self.multires            # input_ch - 3
        self.dims = dims
        self.num_layers = len(dims)

        m6 = 6 * self.multires
        if mode == "idr":
            self.seg_widths = (3, 3, 3, d_feature)
            self.seg_rows = (0, 3, 6 + m6, 9 + m6)
            self.vd_idx, self.sc_row = 1, 6
        elif mode == "no_normal":
            self.seg_widths = (3, 3, d_feature)
            self.seg_rows = (0, 3, 6 + m6)
            self.vd_idx, self.sc_row = 1, 6
        elif mode == "no_view_dir":
            self.seg_widths = (3, 3, d_feature)
            self.seg_rows = (0, 3, 6)
            self.vd_idx, self.sc_row = None, None
        elif mode == "only_pos":
            self.seg_widths = (3, d_feature)
            self.seg_rows = (0, 3)
            self.vd_idx, self.sc_row = None, None
        else:
            raise ValueError(f"unknown mode {mode}")
        assert sum(self.seg_widths) + m6 == dims[0]

        # Deterministic synthetic parameters; weight_norm is folded host-side:
        #   W_eff = g * v / ||v||_row   (exact reparametrization, f32).
        key = jax.random.PRNGKey(0) if key is None else key
        self.W, self.B = [], []                     # f32 ground truth, (in,out)/(out,)
        for l in range(self.num_layers - 1):
            key, kv, kg, kb = jax.random.split(key, 4)
            din, dout = dims[l], dims[l + 1]
            v = jax.random.normal(kv, (dout, din), jnp.float32) * 0.1
            g = jax.random.uniform(kg, (dout, 1), jnp.float32, 0.5, 1.5)
            b = jax.random.normal(kb, (dout,), jnp.float32) * 0.01
            w = g * v / jnp.linalg.norm(v, axis=1, keepdims=True) if weight_norm else v
            self.W.append(w.T)
            self.B.append(b)

        # Kernel-side params: transposed (out,in) bf16 weight slices, f32 column biases.
        W0, H = self.W[0], dims[1]
        bf16 = jnp.bfloat16
        self.k_w0_segs = [W0[r:r + w, :].T.astype(bf16)
                          for r, w in zip(self.seg_rows, self.seg_widths)]
        if self.multires > 0:
            sc = []
            for f in range(self.multires):
                base = self.sc_row + 6 * f
                sc.append(W0[base:base + 3, :].T)       # sin(v * 2^f) slice
                sc.append(W0[base + 3:base + 6, :].T)   # cos(v * 2^f) slice
            self.k_w0_sc = jnp.stack(sc, 0).astype(bf16)        # (2m, H, 3)
        else:
            self.k_w0_sc = None
        self.k_b0 = self.B[0].reshape(H, 1).astype(jnp.float32)
        self.k_hidden = [(self.W[l].T.astype(bf16),
                          self.B[l].reshape(-1, 1).astype(jnp.float32))
                         for l in range(1, self.num_layers - 1)]

    def _gather_inputs(self, points, normals, view_dirs, feature_vectors):
        if self.mode == "idr":
            return [points, view_dirs, normals, feature_vectors]
        if self.mode == "no_view_dir":
            return [points, normals, feature_vectors]
        if self.mode == "no_normal":
            return [points, view_dirs, feature_vectors]
        return [points, feature_vectors]        # only_pos

    def __call__(self, points, normals, view_dirs, feature_vectors, tile_n=2048):
        inputs = [x.astype(jnp.float32) for x in
                  self._gather_inputs(points, normals, view_dirs, feature_vectors)]
        return color_mlp_pallas(inputs, self.k_w0_segs, self.k_w0_sc, self.k_b0,
                                self.k_hidden, vd_idx=self.vd_idx,
                                multires=self.multires,
                                squeeze_out=self.squeeze_out, tile_n=tile_n)

    # pure f32 reference (same math as the PyTorch module)
    def reference(self, points, normals, view_dirs, feature_vectors):
        vd = embed_view(view_dirs, self.multires) if self.use_embed else view_dirs
        if self.mode == "idr":
            x = jnp.concatenate([points, vd, normals, feature_vectors], -1)
        elif self.mode == "no_view_dir":
            x = jnp.concatenate([points, normals, feature_vectors], -1)
        elif self.mode == "no_normal":
            x = jnp.concatenate([points, vd, feature_vectors], -1)
        else:
            x = jnp.concatenate([points, feature_vectors], -1)
        h = x
        for l in range(self.num_layers - 1):
            h = h @ self.W[l] + self.B[l]
            if l < self.num_layers - 2:
                h = jnp.maximum(h, 0.0)
        return jax.nn.sigmoid(h) if self.squeeze_out else h

    # bf16-quantized reference replicating the kernel's exact math
    def reference_quantized(self, points, normals, view_dirs, feature_vectors):
        inputs = self._gather_inputs(points, normals, view_dirs, feature_vectors)
        xts = [x.astype(jnp.float32).T.astype(jnp.bfloat16) for x in inputs]
        h_t = _mlp_math(xts, self.k_w0_segs, self.k_w0_sc, self.k_b0, self.k_hidden,
                        vd_idx=self.vd_idx, multires=self.multires,
                        squeeze_out=self.squeeze_out)
        return h_t.T


# ---------------------------------------------------------------------------
if __name__ == "__main__":
    # Small synthetic config: mode='idr' (d_in = 9), d_feature = 16, d_hidden = 32,
    # n_layers = 2, multires_view = 4, squeeze_out = True.  N = 256 gives two
    # 128-point grid steps (keeps both v7x TensorCores busy on the parallel axis).
    N = 256
    d_feature, d_in, d_out = 16, 9, 3
    d_hidden, n_layers, multires_view = 32, 2, 4

    net = RenderingNetworkPallas(
        d_feature=d_feature, mode="idr", d_in=d_in, d_out=d_out,
        d_hidden=d_hidden, n_layers=n_layers, weight_norm=True,
        multires_view=multires_view, squeeze_out=True,
        key=jax.random.PRNGKey(1))

    key = jax.random.PRNGKey(0)
    kp, kn, kv, kf = jax.random.split(key, 4)
    points = jax.random.normal(kp, (N, 3), jnp.float32)
    normals = jax.random.normal(kn, (N, 3), jnp.float32)
    view_dirs = jax.random.normal(kv, (N, 3), jnp.float32)
    feature_vectors = jax.random.normal(kf, (N, d_feature), jnp.float32)

    out = net(points, normals, view_dirs, feature_vectors)
    out = jax.block_until_ready(out)
    assert out.shape == (N, d_out)

    # 1) tight check against a JAX reference using the SAME bf16 quantization.
    ref_q = net.reference_quantized(points, normals, view_dirs, feature_vectors)
    assert jnp.allclose(out, ref_q, atol=5e-3, rtol=0.0), (
        f"mismatch vs bf16 reference: {float(jnp.max(jnp.abs(out - ref_q)))}")
    # 2) loose check against the full-precision (PyTorch-equivalent) f32 math.
    ref_f = net.reference(points, normals, view_dirs, feature_vectors)
    assert jnp.allclose(out, ref_f, atol=3e-2, rtol=0.0), (
        f"mismatch vs f32 reference: {float(jnp.max(jnp.abs(out - ref_f)))}")

    print("KERNEL_OK")
</pallas_src>

<mosaic_0001>
module attributes {stable_mosaic.version = 11 : i64} {
  func.func @_color_mlp_kernel(%arg0: i32, %arg1: memref<3x128xbf16, #tpu.memory_space<vmem>>, %arg2: memref<3x128xbf16, #tpu.memory_space<vmem>>, %arg3: memref<3x128xbf16, #tpu.memory_space<vmem>>, %arg4: memref<16x128xbf16, #tpu.memory_space<vmem>>, %arg5: memref<32x3xbf16, #tpu.memory_space<vmem>>, %arg6: memref<32x3xbf16, #tpu.memory_space<vmem>>, %arg7: memref<32x3xbf16, #tpu.memory_space<vmem>>, %arg8: memref<32x16xbf16, #tpu.memory_space<vmem>>, %arg9: memref<8x32x3xbf16, #tpu.memory_space<vmem>>, %arg10: memref<32x1xf32, #tpu.memory_space<vmem>>, %arg11: memref<32x32xbf16, #tpu.memory_space<vmem>>, %arg12: memref<32x1xf32, #tpu.memory_space<vmem>>, %arg13: memref<3x32xbf16, #tpu.memory_space<vmem>>, %arg14: memref<3x1xf32, #tpu.memory_space<vmem>>, %arg15: memref<3x128xf32, #tpu.memory_space<vmem>>) attributes {dimension_semantics = [#tpu.dimension_semantics<parallel>], iteration_bounds = array<i64: 2>, scalar_prefetch = 0 : i64, scratch_operands = 0 : i64, tpu.core_type = #tpu.core_type<tc>, window_params = [{transform_indices = @transform_0, window_bounds = array<i64: 3, 128>}, {transform_indices = @transform_1, window_bounds = array<i64: 3, 128>}, {transform_indices = @transform_2, window_bounds = array<i64: 3, 128>}, {transform_indices = @transform_3, window_bounds = array<i64: 16, 128>}, {pipeline_mode = #tpu.pipeline_mode<synchronous>, transform_indices = @transform_4, window_bounds = array<i64: 32, 3>}, {pipeline_mode = #tpu.pipeline_mode<synchronous>, transform_indices = @transform_5, window_bounds = array<i64: 32, 3>}, {pipeline_mode = #tpu.pipeline_mode<synchronous>, transform_indices = @transform_6, window_bounds = array<i64: 32, 3>}, {pipeline_mode = #tpu.pipeline_mode<synchronous>, transform_indices = @transform_7, window_bounds = array<i64: 32, 16>}, {pipeline_mode = #tpu.pipeline_mode<synchronous>, transform_indices = @transform_8, window_bounds = array<i64: 8, 32, 3>}, {pipeline_mode = #tpu.pipeline_mode<synchronous>, transform_indices = @transform_9, window_bounds = array<i64: 32, 1>}, {pipeline_mode = #tpu.pipeline_mode<synchronous>, transform_indices = @transform_10, window_bounds = array<i64: 32, 32>}, {pipeline_mode = #tpu.pipeline_mode<synchronous>, transform_indices = @transform_11, window_bounds = array<i64: 32, 1>}, {pipeline_mode = #tpu.pipeline_mode<synchronous>, transform_indices = @transform_12, window_bounds = array<i64: 3, 32>}, {pipeline_mode = #tpu.pipeline_mode<synchronous>, transform_indices = @transform_13, window_bounds = array<i64: 3, 1>}, {transform_indices = @transform_14, window_bounds = array<i64: 3, 128>}]} {
    %c0 = arith.constant 0 : index
    %c0_0 = arith.constant 0 : index
    %0 = vector.load %arg1[%c0, %c0_0] : memref<3x128xbf16, #tpu.memory_space<vmem>>, vector<3x128xbf16>
    %c0_1 = arith.constant 0 : index
    %c0_2 = arith.constant 0 : index
    %1 = vector.load %arg2[%c0_1, %c0_2] : memref<3x128xbf16, #tpu.memory_space<vmem>>, vector<3x128xbf16>
    %c0_3 = arith.constant 0 : index
    %c0_4 = arith.constant 0 : index
    %2 = vector.load %arg3[%c0_3, %c0_4] : memref<3x128xbf16, #tpu.memory_space<vmem>>, vector<3x128xbf16>
    %c0_5 = arith.constant 0 : index
    %c0_6 = arith.constant 0 : index
    %3 = vector.load %arg4[%c0_5, %c0_6] : memref<16x128xbf16, #tpu.memory_space<vmem>>, vector<16x128xbf16>
    %c0_7 = arith.constant 0 : index
    %c0_8 = arith.constant 0 : index
    %4 = vector.load %arg5[%c0_7, %c0_8] : memref<32x3xbf16, #tpu.memory_space<vmem>>, vector<32x3xbf16>
    %c0_9 = arith.constant 0 : index
    %c0_10 = arith.constant 0 : index
    %5 = vector.load %arg6[%c0_9, %c0_10] : memref<32x3xbf16, #tpu.memory_space<vmem>>, vector<32x3xbf16>
    %c0_11 = arith.constant 0 : index
    %c0_12 = arith.constant 0 : index
    %6 = vector.load %arg7[%c0_11, %c0_12] : memref<32x3xbf16, #tpu.memory_space<vmem>>, vector<32x3xbf16>
    %c0_13 = arith.constant 0 : index
    %c0_14 = arith.constant 0 : index
    %7 = vector.load %arg8[%c0_13, %c0_14] : memref<32x16xbf16, #tpu.memory_space<vmem>>, vector<32x16xbf16>
    %c0_15 = arith.constant 0 : index
    %c0_16 = arith.constant 0 : index
    %8 = vector.load %arg10[%c0_15, %c0_16] : memref<32x1xf32, #tpu.memory_space<vmem>>, vector<32x1xf32>
    %c0_17 = arith.constant 0 : index
    %c0_18 = arith.constant 0 : index
    %9 = vector.load %arg11[%c0_17, %c0_18] : memref<32x32xbf16, #tpu.memory_space<vmem>>, vector<32x32xbf16>
    %c0_19 = arith.constant 0 : index
    %c0_20 = arith.constant 0 : index
    %10 = vector.load %arg12[%c0_19, %c0_20] : memref<32x1xf32, #tpu.memory_space<vmem>>, vector<32x1xf32>
    %c0_21 = arith.constant 0 : index
    %c0_22 = arith.constant 0 : index
    %11 = vector.load %arg13[%c0_21, %c0_22] : memref<3x32xbf16, #tpu.memory_space<vmem>>, vector<3x32xbf16>
    %c0_23 = arith.constant 0 : index
    %c0_24 = arith.constant 0 : index
    %12 = vector.load %arg14[%c0_23, %c0_24] : memref<3x1xf32, #tpu.memory_space<vmem>>, vector<3x1xf32>
    %cst = arith.constant dense<0.000000e+00> : vector<32x128xf32>
    %13 = tpu.matmul %4, %0, %cst {dimension_numbers = #tpu.dot_dimension_numbers<[1], [0], [0], [1], [0, 0, 1, 1], [], []>} : vector<32x3xbf16>, vector<3x128xbf16>, vector<32x128xf32> -> vector<32x128xf32>
    %cst_25 = arith.constant dense<0.000000e+00> : vector<32x128xf32>
    %14 = tpu.matmul %5, %1, %cst_25 {dimension_numbers = #tpu.dot_dimension_numbers<[1], [0], [0], [1], [0, 0, 1, 1], [], []>} : vector<32x3xbf16>, vector<3x128xbf16>, vector<32x128xf32> -> vector<32x128xf32>
    %15 = arith.addf %13, %14 : vector<32x128xf32>
    %cst_26 = arith.constant dense<0.000000e+00> : vector<32x128xf32>
    %16 = tpu.matmul %6, %2, %cst_26 {dimension_numbers = #tpu.dot_dimension_numbers<[1], [0], [0], [1], [0, 0, 1, 1], [], []>} : vector<32x3xbf16>, vector<3x128xbf16>, vector<32x128xf32> -> vector<32x128xf32>
    %17 = arith.addf %15, %16 : vector<32x128xf32>
    %cst_27 = arith.constant dense<0.000000e+00> : vector<32x128xf32>
    %18 = tpu.matmul %7, %3, %cst_27 {dimension_numbers = #tpu.dot_dimension_numbers<[1], [0], [0], [1], [0, 0, 1, 1], [], []>} : vector<32x16xbf16>, vector<16x128xbf16>, vector<32x128xf32> -> vector<32x128xf32>
    %19 = arith.addf %17, %18 : vector<32x128xf32>
    %20 = arith.extf %1 : vector<3x128xbf16> to vector<3x128xf32>
    %cst_28 = arith.constant 1.000000e+00 : f32
    %21 = vector.broadcast %cst_28 : f32 to vector<3x128xf32>
    %22 = arith.mulf %20, %21 : vector<3x128xf32>
    %23 = math.sin %22 : vector<3x128xf32>
    %24 = arith.truncf %23 : vector<3x128xf32> to vector<3x128xbf16>
    %cst_29 = arith.constant 1.000000e+00 : f32
    %25 = vector.broadcast %cst_29 : f32 to vector<3x128xf32>
    %26 = arith.mulf %20, %25 : vector<3x128xf32>
    %27 = math.cos %26 : vector<3x128xf32>
    %28 = arith.truncf %27 : vector<3x128xf32> to vector<3x128xbf16>
    %c0_30 = arith.constant 0 : index
    %c0_31 = arith.constant 0 : index
    %c0_32 = arith.constant 0 : index
    %29 = vector.load %arg9[%c0_30, %c0_31, %c0_32] : memref<8x32x3xbf16, #tpu.memory_space<vmem>>, vector<1x32x3xbf16>
    %30 = vector.shape_cast %29 : vector<1x32x3xbf16> to vector<32x3xbf16>
    %cst_33 = arith.constant dense<0.000000e+00> : vector<32x128xf32>
    %31 = tpu.matmul %30, %24, %cst_33 {dimension_numbers = #tpu.dot_dimension_numbers<[1], [0], [0], [1], [0, 0, 1, 1], [], []>} : vector<32x3xbf16>, vector<3x128xbf16>, vector<32x128xf32> -> vector<32x128xf32>
    %32 = arith.addf %19, %31 : vector<32x128xf32>
    %c1 = arith.constant 1 : index
    %c0_34 = arith.constant 0 : index
    %c0_35 = arith.constant 0 : index
    %33 = vector.load %arg9[%c1, %c0_34, %c0_35] : memref<8x32x3xbf16, #tpu.memory_space<vmem>>, vector<1x32x3xbf16>
    %34 = vector.shape_cast %33 : vector<1x32x3xbf16> to vector<32x3xbf16>
    %cst_36 = arith.constant dense<0.000000e+00> : vector<32x128xf32>
    %35 = tpu.matmul %34, %28, %cst_36 {dimension_numbers = #tpu.dot_dimension_numbers<[1], [0], [0], [1], [0, 0, 1, 1], [], []>} : vector<32x3xbf16>, vector<3x128xbf16>, vector<32x128xf32> -> vector<32x128xf32>
    %36 = arith.addf %32, %35 : vector<32x128xf32>
    %cst_37 = arith.constant 2.000000e+00 : f32
    %37 = vector.broadcast %cst_37 : f32 to vector<3x128xf32>
    %38 = arith.mulf %20, %37 : vector<3x128xf32>
    %39 = math.sin %38 : vector<3x128xf32>
    %40 = arith.truncf %39 : vector<3x128xf32> to vector<3x128xbf16>
    %cst_38 = arith.constant 2.000000e+00 : f32
    %41 = vector.broadcast %cst_38 : f32 to vector<3x128xf32>
    %42 = arith.mulf %20, %41 : vector<3x128xf32>
    %43 = math.cos %42 : vector<3x128xf32>
    %44 = arith.truncf %43 : vector<3x128xf32> to vector<3x128xbf16>
    %c2 = arith.constant 2 : index
    %c0_39 = arith.constant 0 : index
    %c0_40 = arith.constant 0 : index
    %45 = vector.load %arg9[%c2, %c0_39, %c0_40] : memref<8x32x3xbf16, #tpu.memory_space<vmem>>, vector<1x32x3xbf16>
    %46 = vector.shape_cast %45 : vector<1x32x3xbf16> to vector<32x3xbf16>
    %cst_41 = arith.constant dense<0.000000e+00> : vector<32x128xf32>
    %47 = tpu.matmul %46, %40, %cst_41 {dimension_numbers = #tpu.dot_dimension_numbers<[1], [0], [0], [1], [0, 0, 1, 1], [], []>} : vector<32x3xbf16>, vector<3x128xbf16>, vector<32x128xf32> -> vector<32x128xf32>
    %48 = arith.addf %36, %47 : vector<32x128xf32>
    %c3 = arith.constant 3 : index
    %c0_42 = arith.constant 0 : index
    %c0_43 = arith.constant 0 : index
    %49 = vector.load %arg9[%c3, %c0_42, %c0_43] : memref<8x32x3xbf16, #tpu.memory_space<vmem>>, vector<1x32x3xbf16>
    %50 = vector.shape_cast %49 : vector<1x32x3xbf16> to vector<32x3xbf16>
    %cst_44 = arith.constant dense<0.000000e+00> : vector<32x128xf32>
    %51 = tpu.matmul %50, %44, %cst_44 {dimension_numbers = #tpu.dot_dimension_numbers<[1], [0], [0], [1], [0, 0, 1, 1], [], []>} : vector<32x3xbf16>, vector<3x128xbf16>, vector<32x128xf32> -> vector<32x128xf32>
    %52 = arith.addf %48, %51 : vector<32x128xf32>
    %cst_45 = arith.constant 4.000000e+00 : f32
    %53 = vector.broadcast %cst_45 : f32 to vector<3x128xf32>
    %54 = arith.mulf %20, %53 : vector<3x128xf32>
    %55 = math.sin %54 : vector<3x128xf32>
    %56 = arith.truncf %55 : vector<3x128xf32> to vector<3x128xbf16>
    %cst_46 = arith.constant 4.000000e+00 : f32
    %57 = vector.broadcast %cst_46 : f32 to vector<3x128xf32>
    %58 = arith.mulf %20, %57 : vector<3x128xf32>
    %59 = math.cos %58 : vector<3x128xf32>
    %60 = arith.truncf %59 : vector<3x128xf32> to vector<3x128xbf16>
    %c4 = arith.constant 4 : index
    %c0_47 = arith.constant 0 : index
    %c0_48 = arith.constant 0 : index
    %61 = vector.load %arg9[%c4, %c0_47, %c0_48] : memref<8x32x3xbf16, #tpu.memory_space<vmem>>, vector<1x32x3xbf16>
    %62 = vector.shape_cast %61 : vector<1x32x3xbf16> to vector<32x3xbf16>
    %cst_49 = arith.constant dense<0.000000e+00> : vector<32x128xf32>
    %63 = tpu.matmul %62, %56, %cst_49 {dimension_numbers = #tpu.dot_dimension_numbers<[1], [0], [0], [1], [0, 0, 1, 1], [], []>} : vector<32x3xbf16>, vector<3x128xbf16>, vector<32x128xf32> -> vector<32x128xf32>
    %64 = arith.addf %52, %63 : vector<32x128xf32>
    %c5 = arith.constant 5 : index
    %c0_50 = arith.constant 0 : index
    %c0_51 = arith.constant 0 : index
    %65 = vector.load %arg9[%c5, %c0_50, %c0_51] : memref<8x32x3xbf16, #tpu.memory_space<vmem>>, vector<1x32x3xbf16>
    %66 = vector.shape_cast %65 : vector<1x32x3xbf16> to vector<32x3xbf16>
    %cst_52 = arith.constant dense<0.000000e+00> : vector<32x128xf32>
    %67 = tpu.matmul %66, %60, %cst_52 {dimension_numbers = #tpu.dot_dimension_numbers<[1], [0], [0], [1], [0, 0, 1, 1], [], []>} : vector<32x3xbf16>, vector<3x128xbf16>, vector<32x128xf32> -> vector<32x128xf32>
    %68 = arith.addf %64, %67 : vector<32x128xf32>
    %cst_53 = arith.constant 8.000000e+00 : f32
    %69 = vector.broadcast %cst_53 : f32 to vector<3x128xf32>
    %70 = arith.mulf %20, %69 : vector<3x128xf32>
    %71 = math.sin %70 : vector<3x128xf32>
    %72 = arith.truncf %71 : vector<3x128xf32> to vector<3x128xbf16>
    %cst_54 = arith.constant 8.000000e+00 : f32
    %73 = vector.broadcast %cst_54 : f32 to vector<3x128xf32>
    %74 = arith.mulf %20, %73 : vector<3x128xf32>
    %75 = math.cos %74 : vector<3x128xf32>
    %76 = arith.truncf %75 : vector<3x128xf32> to vector<3x128xbf16>
    %c6 = arith.constant 6 : index
    %c0_55 = arith.constant 0 : index
    %c0_56 = arith.constant 0 : index
    %77 = vector.load %arg9[%c6, %c0_55, %c0_56] : memref<8x32x3xbf16, #tpu.memory_space<vmem>>, vector<1x32x3xbf16>
    %78 = vector.shape_cast %77 : vector<1x32x3xbf16> to vector<32x3xbf16>
    %cst_57 = arith.constant dense<0.000000e+00> : vector<32x128xf32>
    %79 = tpu.matmul %78, %72, %cst_57 {dimension_numbers = #tpu.dot_dimension_numbers<[1], [0], [0], [1], [0, 0, 1, 1], [], []>} : vector<32x3xbf16>, vector<3x128xbf16>, vector<32x128xf32> -> vector<32x128xf32>
    %80 = arith.addf %68, %79 : vector<32x128xf32>
    %c7 = arith.constant 7 : index
    %c0_58 = arith.constant 0 : index
    %c0_59 = arith.constant 0 : index
    %81 = vector.load %arg9[%c7, %c0_58, %c0_59] : memref<8x32x3xbf16, #tpu.memory_space<vmem>>, vector<1x32x3xbf16>
    %82 = vector.shape_cast %81 : vector<1x32x3xbf16> to vector<32x3xbf16>
    %cst_60 = arith.constant dense<0.000000e+00> : vector<32x128xf32>
    %83 = tpu.matmul %82, %76, %cst_60 {dimension_numbers = #tpu.dot_dimension_numbers<[1], [0], [0], [1], [0, 0, 1, 1], [], []>} : vector<32x3xbf16>, vector<3x128xbf16>, vector<32x128xf32> -> vector<32x128xf32>
    %84 = arith.addf %80, %83 : vector<32x128xf32>
    %85 = vector.broadcast %8 : vector<32x1xf32> to vector<32x128xf32>
    %86 = arith.addf %84, %85 : vector<32x128xf32>
    %cst_61 = arith.constant 0.000000e+00 : f32
    %87 = vector.broadcast %cst_61 : f32 to vector<32x128xf32>
    %88 = arith.maximumf %86, %87 : vector<32x128xf32>
    %89 = arith.truncf %88 : vector<32x128xf32> to vector<32x128xbf16>
    %cst_62 = arith.constant dense<0.000000e+00> : vector<32x128xf32>
    %90 = tpu.matmul %9, %89, %cst_62 {dimension_numbers = #tpu.dot_dimension_numbers<[1], [0], [0], [1], [0, 0, 1, 1], [], []>} : vector<32x32xbf16>, vector<32x128xbf16>, vector<32x128xf32> -> vector<32x128xf32>
    %91 = vector.broadcast %10 : vector<32x1xf32> to vector<32x128xf32>
    %92 = arith.addf %90, %91 : vector<32x128xf32>
    %cst_63 = arith.constant 0.000000e+00 : f32
    %93 = vector.broadcast %cst_63 : f32 to vector<32x128xf32>
    %94 = arith.maximumf %92, %93 : vector<32x128xf32>
    %95 = arith.truncf %94 : vector<32x128xf32> to vector<32x128xbf16>
    %cst_64 = arith.constant dense<0.000000e+00> : vector<3x128xf32>
    %96 = tpu.matmul %11, %95, %cst_64 {dimension_numbers = #tpu.dot_dimension_numbers<[1], [0], [0], [1], [0, 0, 1, 1], [], []>} : vector<3x32xbf16>, vector<32x128xbf16>, vector<3x128xf32> -> vector<3x128xf32>
    %97 = vector.broadcast %12 : vector<3x1xf32> to vector<3x128xf32>
    %98 = arith.addf %96, %97 : vector<3x128xf32>
    %99 = arith.negf %98 : vector<3x128xf32>
    %100 = math.exp %99 : vector<3x128xf32>
    %cst_65 = arith.constant 1.000000e+00 : f32
    %101 = vector.broadcast %cst_65 : f32 to vector<3x128xf32>
    %102 = arith.addf %101, %100 : vector<3x128xf32>
    %103 = arith.divf %101, %102 : vector<3x128xf32>
    %c0_66 = arith.constant 0 : index
    %c0_67 = arith.constant 0 : index
    %104 = vector.load %arg15[%c0_66, %c0_67] : memref<3x128xf32, #tpu.memory_space<vmem>>, vector<3x128xf32>
    tpu.vector_store %arg15[%c0_66, %c0_67], %103 {strides = array<i32>} : memref<3x128xf32, #tpu.memory_space<vmem>>, vector<3x128xf32>,
    return
  }
  func.func @transform_0(%arg0: i32) -> (i32, i32) {
    %c0_i32 = arith.constant 0 : i32
    %c0_i32_0 = arith.constant 0 : i32
    return %c0_i32, %arg0 : i32, i32
  }
  func.func @transform_1(%arg0: i32) -> (i32, i32) {
    %c0_i32 = arith.constant 0 : i32
    %c0_i32_0 = arith.constant 0 : i32
    return %c0_i32, %arg0 : i32, i32
  }
  func.func @transform_2(%arg0: i32) -> (i32, i32) {
    %c0_i32 = arith.constant 0 : i32
    %c0_i32_0 = arith.constant 0 : i32
    return %c0_i32, %arg0 : i32, i32
  }
  func.func @transform_3(%arg0: i32) -> (i32, i32) {
    %c0_i32 = arith.constant 0 : i32
    %c0_i32_0 = arith.constant 0 : i32
    return %c0_i32, %arg0 : i32, i32
  }
  func.func @transform_4(%arg0: i32) -> (i32, i32) {
    %c0_i32 = arith.constant 0 : i32
    %c0_i32_0 = arith.constant 0 : i32
    %c0_i32_1 = arith.constant 0 : i32
    return %c0_i32, %c0_i32_0 : i32, i32
  }
  func.func @transform_5(%arg0: i32) -> (i32, i32) {
    %c0_i32 = arith.constant 0 : i32
    %c0_i32_0 = arith.constant 0 : i32
    %c0_i32_1 = arith.constant 0 : i32
    return %c0_i32, %c0_i32_0 : i32, i32
  }
  func.func @transform_6(%arg0: i32) -> (i32, i32) {
    %c0_i32 = arith.constant 0 : i32
    %c0_i32_0 = arith.constant 0 : i32
    %c0_i32_1 = arith.constant 0 : i32
    return %c0_i32, %c0_i32_0 : i32, i32
  }
  func.func @transform_7(%arg0: i32) -> (i32, i32) {
    %c0_i32 = arith.constant 0 : i32
    %c0_i32_0 = arith.constant 0 : i32
    %c0_i32_1 = arith.constant 0 : i32
    return %c0_i32, %c0_i32_0 : i32, i32
  }
  func.func @transform_8(%arg0: i32) -> (i32, i32, i32) {
    %c0_i32 = arith.constant 0 : i32
    %c0_i32_0 = arith.constant 0 : i32
    %c0_i32_1 = arith.constant 0 : i32
    %c0_i32_2 = arith.constant 0 : i32
    return %c0_i32, %c0_i32_0, %c0_i32_1 : i32, i32, i32
  }
  func.func @transform_9(%arg0: i32) -> (i32, i32) {
    %c0_i32 = arith.constant 0 : i32
    %c0_i32_0 = arith.constant 0 : i32
    %c0_i32_1 = arith.constant 0 : i32
    return %c0_i32, %c0_i32_0 : i32, i32
  }
  func.func @transform_10(%arg0: i32) -> (i32, i32) {
    %c0_i32 = arith.constant 0 : i32
    %c0_i32_0 = arith.constant 0 : i32
    %c0_i32_1 = arith.constant 0 : i32
    return %c0_i32, %c0_i32_0 : i32, i32
  }
  func.func @transform_11(%arg0: i32) -> (i32, i32) {
    %c0_i32 = arith.constant 0 : i32
    %c0_i32_0 = arith.constant 0 : i32
    %c0_i32_1 = arith.constant 0 : i32
    return %c0_i32, %c0_i32_0 : i32, i32
  }
  func.func @transform_12(%arg0: i32) -> (i32, i32) {
    %c0_i32 = arith.constant 0 : i32
    %c0_i32_0 = arith.constant 0 : i32
    %c0_i32_1 = arith.constant 0 : i32
    return %c0_i32, %c0_i32_0 : i32, i32
  }
  func.func @transform_13(%arg0: i32) -> (i32, i32) {
    %c0_i32 = arith.constant 0 : i32
    %c0_i32_0 = arith.constant 0 : i32
    %c0_i32_1 = arith.constant 0 : i32
    return %c0_i32, %c0_i32_0 : i32, i32
  }
  func.func @transform_14(%arg0: i32) -> (i32, i32) {
    %c0_i32 = arith.constant 0 : i32
    %c0_i32_0 = arith.constant 0 : i32
    return %c0_i32, %arg0 : i32, i32
  }
}

</mosaic_0001>

<llo_original>
// kernel: tpu_custom_call.1
$region0: #{tpu_custom_call.1}
  #allocation0 [shape = 'u32[]', space=smem, size = 0x4, offset = 0x4, fixed_abs, tag = 'smem constant byte address 0x4 - core index']
  #allocation1 [shape = 'u32[144,128]{1,0:T(1,128)}', space=vmem, size = 0x12000, scoped, tag = 'internal scratch']
  %s0 = inlined_call_operand.vmem [shape: bf16[3,256], index: 0, kind: input, shape index: {}]
  %s1 = inlined_call_operand.vmem [shape: bf16[3,256], index: 1, kind: input, shape index: {}]
  %s2 = inlined_call_operand.vmem [shape: bf16[3,256], index: 2, kind: input, shape index: {}]
  %s3 = inlined_call_operand.vmem [shape: bf16[16,256], index: 3, kind: input, shape index: {}]
  %s4 = inlined_call_operand.vmem [shape: bf16[32,3], index: 4, kind: input, shape index: {}]
  %s5 = inlined_call_operand.vmem [shape: bf16[32,3], index: 5, kind: input, shape index: {}]
  %s6 = inlined_call_operand.vmem [shape: bf16[32,3], index: 6, kind: input, shape index: {}]
  %s7 = inlined_call_operand.vmem [shape: bf16[32,16], index: 7, kind: input, shape index: {}]
  %s8 = inlined_call_operand.vmem [shape: bf16[8,32,3], index: 8, kind: input, shape index: {}]
  %s9 = inlined_call_operand.vmem [shape: f32[32,1], index: 9, kind: input, shape index: {}]
  %s10 = inlined_call_operand.vmem [shape: bf16[32,32], index: 10, kind: input, shape index: {}]
  %s11 = inlined_call_operand.vmem [shape: f32[32,1], index: 11, kind: input, shape index: {}]
  %s12 = inlined_call_operand.vmem [shape: bf16[3,32], index: 12, kind: input, shape index: {}]
  %s13 = inlined_call_operand.vmem [shape: f32[3,1], index: 13, kind: input, shape index: {}]
  %s14 = inlined_call_operand.hbm [shape: f32[3,256], index: 14, kind: output, shape index: {}]
  %s15 = sld [smem:[#allocation0]]
  $region130: #{tpu_custom_call.1} parent=0
    _
  %s17 = ssub.s32 1, %s15
  %s18 = scalar_select 0, %s17, %s15
  $region1: #{tpu_custom_call.1} parent=0
    #allocation2 [shape = 'u8[8192]{0}', space=vmem, size = 0x2000, scoped, tag = 'input window, operand 3']
    #allocation3 [shape = 'u8[4096]{0}', space=vmem, size = 0x1000, scoped, tag = 'output window, operand 0']
    #allocation4 [shape = 's32[2]{0}', space=sflag, size = 0x8, scoped, tag = 'scoped memory for tpu_custom_call.1']
    %19 = vsyncpa [#allocation4], 0
    %s20 = scalar_lea.sflag [#allocation4], 1
    %21 = vsyncpa %s20, 0
    loop: start=0, step=1, limit=4
    $region2: #{tpu_custom_call.1} parent=1 // loop_pre_header
      _
    $region3: #{tpu_custom_call.1} parent=1 // loop_header
      %s23 = sphi 0, %s27
      %p24 = scmp.ge.s32.totalorder %s23, 4
      %s33 = sphi 0, %s35
      %s36 = sphi 0, %s33
      %s37 = sphi 0, %s36
      %s53 = sphi 0, %s37
      %s59 = sphi 0, %s61
      %s62 = sphi 0, %s59
      %s63 = sphi 0, %s62
      %s79 = sphi 0, %s63
      %s85 = sphi 0, %s87
      %s88 = sphi 0, %s85
      %s89 = sphi 0, %s88
      %s105 = sphi 0, %s89
      %s111 = sphi 0, %s113
      %s114 = sphi 0, %s111
      %s115 = sphi 0, %s114
      %s131 = sphi 0, %s115
      %s135 = sphi 0, %s135
      %s137 = sphi 0, %s135
      %s138 = sphi 0, %s137
      %s152 = sphi 0, %s138
      %s156 = sphi 0, %s156
      %s158 = sphi 0, %s156
      %s159 = sphi 0, %s158
      %s173 = sphi 0, %s159
      %s177 = sphi 0, %s177
      %s179 = sphi 0, %s177
      %s180 = sphi 0, %s179
      %s194 = sphi 0, %s180
      %s198 = sphi 0, %s198
      %s200 = sphi 0, %s198
      %s201 = sphi 0, %s200
      %s215 = sphi 0, %s201
      %s219 = sphi 0, %s219
      %s221 = sphi 0, %s219
      %s222 = sphi 0, %s221
      %s236 = sphi 0, %s222
      %s240 = sphi 0, %s240
      %s242 = sphi 0, %s240
      %s243 = sphi 0, %s242
      %s257 = sphi 0, %s243
      %s261 = sphi 0, %s261
      %s263 = sphi 0, %s261
      %s264 = sphi 0, %s263
      %s278 = sphi 0, %s264
      %s282 = sphi 0, %s282
      %s284 = sphi 0, %s282
      %s285 = sphi 0, %s284
      %s299 = sphi 0, %s285
      %s303 = sphi 0, %s303
      %s305 = sphi 0, %s303
      %s306 = sphi 0, %s305
      %s320 = sphi 0, %s306
      %s324 = sphi 0, %s324
      %s326 = sphi 0, %s324
      %s327 = sphi 0, %s326
      %s341 = sphi 0, %s327
      %s347 = sphi 0, %s349
      %s350 = sphi 0, %s347
      %s351 = sphi 0, %s350
      %s367 = sphi 0, %s351
    $region4: #{tpu_custom_call.1} parent=1 // loop_header_branch
      %26 = sbr.rel (%p24) target = $region8
    $region5: #{tpu_custom_call.1} parent=1 // loop_body
      %s28 = ssub.s32 %s23, 1
      %s29 = ssub.s32 %s23, 2
      %s30 = sadd.s32 %s23, 1
      %s31 = ssub.s32 %s23, %s30
      %p32 = scmp.eq.s32.totalorder %s31, 0
      %s34 = sadd.s32 %s33, 1
      %s35 = scalar_select %p32, %s33, %s34
      %p38 = pneg %p32
      %p39 = scmp.eq.s32.totalorder %s23, 1
      %p40 = por %p38, %p39
      %p41 = scmp.ne.s32.totalorder %s33, %s36
      %p42 = scmp.eq.s32.totalorder %s23, 0
      %p43 = por %p41, %p42
      %p44 = scmp.ne.s32.totalorder %s33, %s36
      %p45 = scmp.eq.s32.totalorder %s28, 1
      %p46 = por %p44, %p45
      %p47 = scmp.ne.s32.totalorder %s36, %s37
      %p48 = scmp.eq.s32.totalorder %s28, 0
      %p49 = por %p47, %p48
      %p50 = scmp.ne.s32.totalorder %s36, %s37
      %p51 = scmp.eq.s32.totalorder %s29, 1
      %p52 = por %p50, %p51
      %p54 = scmp.ne.s32.totalorder %s37, %s53
      %p55 = scmp.eq.s32.totalorder %s29, 0
      %p56 = por %p54, %p55
      %s57 = ssub.s32 %s23, %s30
      %p58 = scmp.eq.s32.totalorder %s57, 0
      %s60 = sadd.s32 %s59, 1
      %s61 = scalar_select %p58, %s59, %s60
      %p64 = pneg %p58
      %p65 = scmp.eq.s32.totalorder %s23, 1
      %p66 = por %p64, %p65
      %p67 = scmp.ne.s32.totalorder %s59, %s62
      %p68 = scmp.eq.s32.totalorder %s23, 0
      %p69 = por %p67, %p68
      %p70 = scmp.ne.s32.totalorder %s59, %s62
      %p71 = scmp.eq.s32.totalorder %s28, 1
      %p72 = por %p70, %p71
      %p73 = scmp.ne.s32.totalorder %s62, %s63
      %p74 = scmp.eq.s32.totalorder %s28, 0
      %p75 = por %p73, %p74
      %p76 = scmp.ne.s32.totalorder %s62, %s63
      %p77 = scmp.eq.s32.totalorder %s29, 1
      %p78 = por %p76, %p77
      %p80 = scmp.ne.s32.totalorder %s63, %s79
      %p81 = scmp.eq.s32.totalorder %s29, 0
      %p82 = por %p80, %p81
      %s83 = ssub.s32 %s23, %s30
      %p84 = scmp.eq.s32.totalorder %s83, 0
      %s86 = sadd.s32 %s85, 1
      %s87 = scalar_select %p84, %s85, %s86
      %p90 = pneg %p84
      %p91 = scmp.eq.s32.totalorder %s23, 1
      %p92 = por %p90, %p91
      %p93 = scmp.ne.s32.totalorder %s85, %s88
      %p94 = scmp.eq.s32.totalorder %s23, 0
      %p95 = por %p93, %p94
      %p96 = scmp.ne.s32.totalorder %s85, %s88
      %p97 = scmp.eq.s32.totalorder %s28, 1
      %p98 = por %p96, %p97
      %p99 = scmp.ne.s32.totalorder %s88, %s89
      %p100 = scmp.eq.s32.totalorder %s28, 0
      %p101 = por %p99, %p100
      %p102 = scmp.ne.s32.totalorder %s88, %s89
      %p103 = scmp.eq.s32.totalorder %s29, 1
      %p104 = por %p102, %p103
      %p106 = scmp.ne.s32.totalorder %s89, %s105
      %p107 = scmp.eq.s32.totalorder %s29, 0
      %p108 = por %p106, %p107
      %s109 = ssub.s32 %s23, %s30
      %p110 = scmp.eq.s32.totalorder %s109, 0
      %s112 = sadd.s32 %s111, 1
      %s113 = scalar_select %p110, %s111, %s112
      %p116 = pneg %p110
      %p117 = scmp.eq.s32.totalorder %s23, 1
      %p118 = por %p116, %p117
      %p119 = scmp.ne.s32.totalorder %s111, %s114
      %p120 = scmp.eq.s32.totalorder %s23, 0
      %p121 = por %p119, %p120
      %p122 = scmp.ne.s32.totalorder %s111, %s114
      %p123 = scmp.eq.s32.totalorder %s28, 1
      %p124 = por %p122, %p123
      %p125 = scmp.ne.s32.totalorder %s114, %s115
      %p126 = scmp.eq.s32.totalorder %s28, 0
      %p127 = por %p125, %p126
      %p128 = scmp.ne.s32.totalorder %s114, %s115
      %p129 = scmp.eq.s32.totalorder %s29, 1
      %p130 = por %p128, %p129
      %p132 = scmp.ne.s32.totalorder %s115, %s131
      %p133 = scmp.eq.s32.totalorder %s29, 0
      %p134 = por %p132, %p133
      %s136 = sadd.s32 %s135, 1
      %p139 = scmp.eq.s32.totalorder %s23, 1
      %p140 = scmp.ne.s32.totalorder %s135, %s137
      %p141 = scmp.eq.s32.totalorder %s23, 0
      %p142 = por %p140, %p141
      %p143 = scmp.ne.s32.totalorder %s135, %s137
      %p144 = scmp.eq.s32.totalorder %s28, 1
      %p145 = por %p143, %p144
      %p146 = scmp.ne.s32.totalorder %s137, %s138
      %p147 = scmp.eq.s32.totalorder %s28, 0
      %p148 = por %p146, %p147
      %p149 = scmp.ne.s32.totalorder %s137, %s138
      %p150 = scmp.eq.s32.totalorder %s29, 1
      %p151 = por %p149, %p150
      %p153 = scmp.ne.s32.totalorder %s138, %s152
      %p154 = scmp.eq.s32.totalorder %s29, 0
      %p155 = por %p153, %p154
      %s157 = sadd.s32 %s156, 1
      %p160 = scmp.eq.s32.totalorder %s23, 1
      %p161 = scmp.ne.s32.totalorder %s156, %s158
      %p162 = scmp.eq.s32.totalorder %s23, 0
      %p163 = por %p161, %p162
      %p164 = scmp.ne.s32.totalorder %s156, %s158
      %p165 = scmp.eq.s32.totalorder %s28, 1
      %p166 = por %p164, %p165
      %p167 = scmp.ne.s32.totalorder %s158, %s159
      %p168 = scmp.eq.s32.totalorder %s28, 0
      %p169 = por %p167, %p168
      %p170 = scmp.ne.s32.totalorder %s158, %s159
      %p171 = scmp.eq.s32.totalorder %s29, 1
      %p172 = por %p170, %p171
      %p174 = scmp.ne.s32.totalorder %s159, %s173
      %p175 = scmp.eq.s32.totalorder %s29, 0
      %p176 = por %p174, %p175
      %s178 = sadd.s32 %s177, 1
      %p181 = scmp.eq.s32.totalorder %s23, 1
      %p182 = scmp.ne.s32.totalorder %s177, %s179
      %p183 = scmp.eq.s32.totalorder %s23, 0
      %p184 = por %p182, %p183
      %p185 = scmp.ne.s32.totalorder %s177, %s179
      %p186 = scmp.eq.s32.totalorder %s28, 1
      %p187 = por %p185, %p186
      %p188 = scmp.ne.s32.totalorder %s179, %s180
      %p189 = scmp.eq.s32.totalorder %s28, 0
      %p190 = por %p188, %p189
      %p191 = scmp.ne.s32.totalorder %s179, %s180
      %p192 = scmp.eq.s32.totalorder %s29, 1
      %p193 = por %p191, %p192
      %p195 = scmp.ne.s32.totalorder %s180, %s194
      %p196 = scmp.eq.s32.totalorder %s29, 0
      %p197 = por %p195, %p196
      %s199 = sadd.s32 %s198, 1
      %p202 = scmp.eq.s32.totalorder %s23, 1
      %p203 = scmp.ne.s32.totalorder %s198, %s200
      %p204 = scmp.eq.s32.totalorder %s23, 0
      %p205 = por %p203, %p204
      %p206 = scmp.ne.s32.totalorder %s198, %s200
      %p207 = scmp.eq.s32.totalorder %s28, 1
      %p208 = por %p206, %p207
      %p209 = scmp.ne.s32.totalorder %s200, %s201
      %p210 = scmp.eq.s32.totalorder %s28, 0
      %p211 = por %p209, %p210
      %p212 = scmp.ne.s32.totalorder %s200, %s201
      %p213 = scmp.eq.s32.totalorder %s29, 1
      %p214 = por %p212, %p213
      %p216 = scmp.ne.s32.totalorder %s201, %s215
      %p217 = scmp.eq.s32.totalorder %s29, 0
      %p218 = por %p216, %p217
      %s220 = sadd.s32 %s219, 1
      %p223 = scmp.eq.s32.totalorder %s23, 1
      %p224 = scmp.ne.s32.totalorder %s219, %s221
      %p225 = scmp.eq.s32.totalorder %s23, 0
      %p226 = por %p224, %p225
      %p227 = scmp.ne.s32.totalorder %s219, %s221
      %p228 = scmp.eq.s32.totalorder %s28, 1
      %p229 = por %p227, %p228
      %p230 = scmp.ne.s32.totalorder %s221, %s222
      %p231 = scmp.eq.s32.totalorder %s28, 0
      %p232 = por %p230, %p231
      %p233 = scmp.ne.s32.totalorder %s221, %s222
      %p234 = scmp.eq.s32.totalorder %s29, 1
      %p235 = por %p233, %p234
      %p237 = scmp.ne.s32.totalorder %s222, %s236
      %p238 = scmp.eq.s32.totalorder %s29, 0
      %p239 = por %p237, %p238
      %s241 = sadd.s32 %s240, 1
      %p244 = scmp.eq.s32.totalorder %s23, 1
      %p245 = scmp.ne.s32.totalorder %s240, %s242
      %p246 = scmp.eq.s32.totalorder %s23, 0
      %p247 = por %p245, %p246
      %p248 = scmp.ne.s32.totalorder %s240, %s242
      %p249 = scmp.eq.s32.totalorder %s28, 1
      %p250 = por %p248, %p249
      %p251 = scmp.ne.s32.totalorder %s242, %s243
      %p252 = scmp.eq.s32.totalorder %s28, 0
      %p253 = por %p251, %p252
      %p254 = scmp.ne.s32.totalorder %s242, %s243
      %p255 = scmp.eq.s32.totalorder %s29, 1
      %p256 = por %p254, %p255
      %p258 = scmp.ne.s32.totalorder %s243, %s257
      %p259 = scmp.eq.s32.totalorder %s29, 0
      %p260 = por %p258, %p259
      %s262 = sadd.s32 %s261, 1
      %p265 = scmp.eq.s32.totalorder %s23, 1
      %p266 = scmp.ne.s32.totalorder %s261, %s263
      %p267 = scmp.eq.s32.totalorder %s23, 0
      %p268 = por %p266, %p267
      %p269 = scmp.ne.s32.totalorder %s261, %s263
      %p270 = scmp.eq.s32.totalorder %s28, 1
      %p271 = por %p269, %p270
      %p272 = scmp.ne.s32.totalorder %s263, %s264
      %p273 = scmp.eq.s32.totalorder %s28, 0
      %p274 = por %p272, %p273
      %p275 = scmp.ne.s32.totalorder %s263, %s264
      %p276 = scmp.eq.s32.totalorder %s29, 1
      %p277 = por %p275, %p276
      %p279 = scmp.ne.s32.totalorder %s264, %s278
      %p280 = scmp.eq.s32.totalorder %s29, 0
      %p281 = por %p279, %p280
      %s283 = sadd.s32 %s282, 1
      %p286 = scmp.eq.s32.totalorder %s23, 1
      %p287 = scmp.ne.s32.totalorder %s282, %s284
      %p288 = scmp.eq.s32.totalorder %s23, 0
      %p289 = por %p287, %p288
      %p290 = scmp.ne.s32.totalorder %s282, %s284
      %p291 = scmp.eq.s32.totalorder %s28, 1
      %p292 = por %p290, %p291
      %p293 = scmp.ne.s32.totalorder %s284, %s285
      %p294 = scmp.eq.s32.totalorder %s28, 0
      %p295 = por %p293, %p294
      %p296 = scmp.ne.s32.totalorder %s284, %s285
      %p297 = scmp.eq.s32.totalorder %s29, 1
      %p298 = por %p296, %p297
      %p300 = scmp.ne.s32.totalorder %s285, %s299
      %p301 = scmp.eq.s32.totalorder %s29, 0
      %p302 = por %p300, %p301
      %s304 = sadd.s32 %s303, 1
      %p307 = scmp.eq.s32.totalorder %s23, 1
      %p308 = scmp.ne.s32.totalorder %s303, %s305
      %p309 = scmp.eq.s32.totalorder %s23, 0
      %p310 = por %p308, %p309
      %p311 = scmp.ne.s32.totalorder %s303, %s305
      %p312 = scmp.eq.s32.totalorder %s28, 1
      %p313 = por %p311, %p312
      %p314 = scmp.ne.s32.totalorder %s305, %s306
      %p315 = scmp.eq.s32.totalorder %s28, 0
      %p316 = por %p314, %p315
      %p317 = scmp.ne.s32.totalorder %s305, %s306
      %p318 = scmp.eq.s32.totalorder %s29, 1
      %p319 = por %p317, %p318
      %p321 = scmp.ne.s32.totalorder %s306, %s320
      %p322 = scmp.eq.s32.totalorder %s29, 0
      %p323 = por %p321, %p322
      %s325 = sadd.s32 %s324, 1
      %p328 = scmp.eq.s32.totalorder %s23, 1
      %p329 = scmp.ne.s32.totalorder %s324, %s326
      %p330 = scmp.eq.s32.totalorder %s23, 0
      %p331 = por %p329, %p330
      %p332 = scmp.ne.s32.totalorder %s324, %s326
      %p333 = scmp.eq.s32.totalorder %s28, 1
      %p334 = por %p332, %p333
      %p335 = scmp.ne.s32.totalorder %s326, %s327
      %p336 = scmp.eq.s32.totalorder %s28, 0
      %p337 = por %p335, %p336
      %p338 = scmp.ne.s32.totalorder %s326, %s327
      %p339 = scmp.eq.s32.totalorder %s29, 1
      %p340 = por %p338, %p339
      %p342 = scmp.ne.s32.totalorder %s327, %s341
      %p343 = scmp.eq.s32.totalorder %s29, 0
      %p344 = por %p342, %p343
      %s345 = ssub.s32 %s23, %s30
      %p346 = scmp.eq.s32.totalorder %s345, 0
      %s348 = sadd.s32 %s347, 1
      %s349 = scalar_select %p346, %s347, %s348
      %p352 = pneg %p346
      %p353 = scmp.eq.s32.totalorder %s23, 1
      %p354 = por %p352, %p353
      %p355 = scmp.ne.s32.totalorder %s347, %s350
      %p356 = scmp.eq.s32.totalorder %s23, 0
      %p357 = por %p355, %p356
      %p358 = scmp.ne.s32.totalorder %s347, %s350
      %p359 = scmp.eq.s32.totalorder %s28, 1
      %p360 = por %p358, %p359
      %p361 = scmp.ne.s32.totalorder %s350, %s351
      %p362 = scmp.eq.s32.totalorder %s28, 0
      %p363 = por %p361, %p362
      %p364 = scmp.ne.s32.totalorder %s350, %s351
      %p365 = scmp.eq.s32.totalorder %s29, 1
      %p366 = por %p364, %p365
      %p368 = scmp.ne.s32.totalorder %s351, %s367
      %p369 = scmp.eq.s32.totalorder %s29, 0
      %p370 = por %p368, %p369
      %p371 = scmp.le.s32.totalorder 1, %s23
      %p372 = scmp.lt.s32.totalorder %s23, 3
      %p373 = pnand %p371, %p372
      %p374 = pneg %p373
      // Predicated region
      $region9: #{tpu_custom_call.1} parent=5 // pred_check
        _
      $region10: #{tpu_custom_call.1} parent=5 // pred_check_branch
        %376 = sbr.rel (%p373) target = $region12
      $region11: #{tpu_custom_call.1} parent=5 // pred_region
        %s377 = ssub.s32 %s23, 1
        // Predicated region
        $region13: #{tpu_custom_call.1} parent=11 // pred_check
          %p378 = pneg %p148
        $region14: #{tpu_custom_call.1} parent=11 // pred_check_branch
          %380 = sbr.rel (%p378) target = $region16
        $region15: #{tpu_custom_call.1} parent=11 // pred_region
          _
        $region16: #{tpu_custom_call.1} parent=11 // pred_fallthru
          _
        // Predicated region
        $region17: #{tpu_custom_call.1} parent=11 // pred_check
          %p381 = pneg %p169
        $region18: #{tpu_custom_call.1} parent=11 // pred_check_branch
          %383 = sbr.rel (%p381) target = $region20
        $region19: #{tpu_custom_call.1} parent=11 // pred_region
          _
        $region20: #{tpu_custom_call.1} parent=11 // pred_fallthru
          _
        // Predicated region
        $region21: #{tpu_custom_call.1} parent=11 // pred_check
          %p384 = pneg %p190
        $region22: #{tpu_custom_call.1} parent=11 // pred_check_branch
          %386 = sbr.rel (%p384) target = $region24
        $region23: #{tpu_custom_call.1} parent=11 // pred_region
          _
        $region24: #{tpu_custom_call.1} parent=11 // pred_fallthru
          _
        // Predicated region
        $region25: #{tpu_custom_call.1} parent=11 // pred_check
          %p387 = pneg %p211
        $region26: #{tpu_custom_call.1} parent=11 // pred_check_branch
          %389 = sbr.rel (%p387) target = $region28
        $region27: #{tpu_custom_call.1} parent=11 // pred_region
          _
        $region28: #{tpu_custom_call.1} parent=11 // pred_fallthru
          _
        // Predicated region
        $region29: #{tpu_custom_call.1} parent=11 // pred_check
          %p390 = pneg %p232
        $region30: #{tpu_custom_call.1} parent=11 // pred_check_branch
          %392 = sbr.rel (%p390) target = $region32
        $region31: #{tpu_custom_call.1} parent=11 // pred_region
          _
        $region32: #{tpu_custom_call.1} parent=11 // pred_fallthru
          _
        // Predicated region
        $region33: #{tpu_custom_call.1} parent=11 // pred_check
          %p393 = pneg %p253
        $region34: #{tpu_custom_call.1} parent=11 // pred_check_branch
          %395 = sbr.rel (%p393) target = $region36
        $region35: #{tpu_custom_call.1} parent=11 // pred_region
          _
        $region36: #{tpu_custom_call.1} parent=11 // pred_fallthru
          _
        // Predicated region
        $region37: #{tpu_custom_call.1} parent=11 // pred_check
          %p396 = pneg %p274
        $region38: #{tpu_custom_call.1} parent=11 // pred_check_branch
          %398 = sbr.rel (%p396) target = $region40
        $region39: #{tpu_custom_call.1} parent=11 // pred_region
          _
        $region40: #{tpu_custom_call.1} parent=11 // pred_fallthru
          _
        // Predicated region
        $region41: #{tpu_custom_call.1} parent=11 // pred_check
          %p399 = pneg %p295
        $region42: #{tpu_custom_call.1} parent=11 // pred_check_branch
          %401 = sbr.rel (%p399) target = $region44
        $region43: #{tpu_custom_call.1} parent=11 // pred_region
          _
        $region44: #{tpu_custom_call.1} parent=11 // pred_fallthru
          _
        // Predicated region
        $region45: #{tpu_custom_call.1} parent=11 // pred_check
          %p402 = pneg %p316
        $region46: #{tpu_custom_call.1} parent=11 // pred_check_branch
          %404 = sbr.rel (%p402) target = $region48
        $region47: #{tpu_custom_call.1} parent=11 // pred_region
          _
        $region48: #{tpu_custom_call.1} parent=11 // pred_fallthru
          _
        // Predicated region
        $region49: #{tpu_custom_call.1} parent=11 // pred_check
          %p405 = pneg %p337
        $region50: #{tpu_custom_call.1} parent=11 // pred_check_branch
          %407 = sbr.rel (%p405) target = $region52
        $region51: #{tpu_custom_call.1} parent=11 // pred_region
          _
        $region52: #{tpu_custom_call.1} parent=11 // pred_fallthru
          _
      $region12: #{tpu_custom_call.1} parent=5 // pred_fallthru
        _
      %p408 = scmp.lt.s32.totalorder %s23, 2
      // Predicated region
      $region53: #{tpu_custom_call.1} parent=5 // pred_check
        %p409 = pneg %p408
      $region54: #{tpu_custom_call.1} parent=5 // pred_check_branch
        %411 = sbr.rel (%p409) target = $region56
      $region55: #{tpu_custom_call.1} parent=5 // pred_region
        // Predicated region
        $region57: #{tpu_custom_call.1} parent=55 // pred_check
          %p412 = pneg %p43
        $region58: #{tpu_custom_call.1} parent=55 // pred_check_branch
          %414 = sbr.rel (%p412) target = $region60
        $region59: #{tpu_custom_call.1} parent=55 // pred_region
          %p415 = scmp.lt.s32.totalorder %s23, 1
          %s416 = scalar_select %p415, %s23, 1
          %s417 = smul.addr %s416, 2
          %s418 = scalar_lea.vmem %s0, %s417
        $region60: #{tpu_custom_call.1} parent=55 // pred_fallthru
          _
        // Predicated region
        $region61: #{tpu_custom_call.1} parent=55 // pred_check
          %p419 = pneg %p69
        $region62: #{tpu_custom_call.1} parent=55 // pred_check_branch
          %421 = sbr.rel (%p419) target = $region64
        $region63: #{tpu_custom_call.1} parent=55 // pred_region
          %p422 = scmp.lt.s32.totalorder %s23, 1
          %s423 = scalar_select %p422, %s23, 1
          %s424 = smul.addr %s423, 2
          %s425 = scalar_lea.vmem %s1, %s424
        $region64: #{tpu_custom_call.1} parent=55 // pred_fallthru
          _
        // Predicated region
        $region65: #{tpu_custom_call.1} parent=55 // pred_check
          %p426 = pneg %p95
        $region66: #{tpu_custom_call.1} parent=55 // pred_check_branch
          %428 = sbr.rel (%p426) target = $region68
        $region67: #{tpu_custom_call.1} parent=55 // pred_region
          %p429 = scmp.lt.s32.totalorder %s23, 1
          %s430 = scalar_select %p429, %s23, 1
          %s431 = smul.addr %s430, 2
          %s432 = scalar_lea.vmem %s2, %s431
        $region68: #{tpu_custom_call.1} parent=55 // pred_fallthru
          _
        // Predicated region
        $region69: #{tpu_custom_call.1} parent=55 // pred_check
          %p433 = pneg %p121
        $region70: #{tpu_custom_call.1} parent=55 // pred_check_branch
          %435 = sbr.rel (%p433) target = $region72
        $region71: #{tpu_custom_call.1} parent=55 // pred_region
          %s436 = sand.u32 %s111, 1
          %s437 = sand.u32 %s111, 1
          %s438 = smul.addr %s437, 8
          %s439 = scalar_lea.vmem [#allocation2], %s438
          %s440 = smul.addr %s23, 4
          %s441 = scalar_lea.vmem %s3, %s440
          // Predicated region
          $region73: #{tpu_custom_call.1} parent=71 // pred_check
            _
          $region74: #{tpu_custom_call.1} parent=71 // pred_check_branch
            %443 = sbr.rel (0) target = $region76
          $region75: #{tpu_custom_call.1} parent=71 // pred_region
            // Predicated region
            $region77: #{tpu_custom_call.1} parent=75 // pred_check
              _
            $region78: #{tpu_custom_call.1} parent=75 // pred_check_branch
              %445 = sbr.rel target = $region80
            $region79: #{tpu_custom_call.1} parent=75 // pred_region
              // Predicated region
              $region92: #{tpu_custom_call.1} parent=79 // pred_check
                _
              $region93: #{tpu_custom_call.1} parent=79 // pred_check_branch
                %462 = sbr.rel (0) target = $region95
              $region94: #{tpu_custom_call.1} parent=79 // pred_region
                loop: start=0, step=1, limit=1
                $region96: #{tpu_custom_call.1} parent=94 // loop_pre_header
                  _
                $region97: #{tpu_custom_call.1} parent=94 // loop_header
                  %s464 = sphi 0, %s468
                  %p465 = scmp.ge.s32.totalorder %s464, 1
                  %s469 = sphi %s441, %s441
                  %s470 = sphi %s439, %s439
                $region98: #{tpu_custom_call.1} parent=94 // loop_header_branch
                  %467 = sbr.rel (%p465) target = $region102
                $region99: #{tpu_custom_call.1} parent=94 // loop_body
                  _
                $region100: #{tpu_custom_call.1} parent=94 // loop_footer
                  %s468 = sadd.s32 1, %s464
                $region101: #{tpu_custom_call.1} parent=94 // loop_footer_branch
                  %463 = sbr.rel target = $region97
                $region102: #{tpu_custom_call.1} parent=94 // loop_exit
                  _
                loop: start=0, step=1, limit=1
                $region103: #{tpu_custom_call.1} parent=94 // loop_pre_header
                  _
                $region104: #{tpu_custom_call.1} parent=94 // loop_header
                  %s473 = sphi 0, %s477
                  %p474 = scmp.ge.s32.totalorder %s473, 1
                  %s478 = sphi %s441, %s441
                  %s479 = sphi %s439, %s439
                $region105: #{tpu_custom_call.1} parent=94 // loop_header_branch
                  %476 = sbr.rel (%p474) target = $region109
                $region106: #{tpu_custom_call.1} parent=94 // loop_body
                  %v480 = vld [vmem:[%s478] sm:$0xf]
                  %481 = vst [vmem:[%s479] sm:$0xf] %v480
                  %v482 = vld [vmem:[%s478 + $0x8] sm:$0xf]
                  %483 = vst [vmem:[%s479 + $0x4] sm:$0xf] %v482
                $region107: #{tpu_custom_call.1} parent=94 // loop_footer
                  %s477 = sadd.s32 1, %s473
                $region108: #{tpu_custom_call.1} parent=94 // loop_footer_branch
                  %472 = sbr.rel target = $region104
                $region109: #{tpu_custom_call.1} parent=94 // loop_exit
                  _
              $region95: #{tpu_custom_call.1} parent=79 // pred_fallthru
                _
            $region80: #{tpu_custom_call.1} parent=75 // pred_fallthru
              _
            // Predicated region
            $region81: #{tpu_custom_call.1} parent=75 // pred_check
              _
            $region82: #{tpu_custom_call.1} parent=75 // pred_check_branch
              %447 = sbr.rel (0) target = $region84
            $region83: #{tpu_custom_call.1} parent=75 // pred_region
              loop: start=0, step=1, limit=1
              $region85: #{tpu_custom_call.1} parent=83 // loop_pre_header
                _
              $region86: #{tpu_custom_call.1} parent=83 // loop_header
                %s450 = sphi 0, %s454
                %p451 = scmp.ge.s32.totalorder %s450, 1
                %s455 = sphi %s441, %s441
                %s456 = sphi %s439, %s439
              $region87: #{tpu_custom_call.1} parent=83 // loop_header_branch
                %453 = sbr.rel (%p451) target = $region91
              $region88: #{tpu_custom_call.1} parent=83 // loop_body
                %v457 = vld [vmem:[%s455] sm:$0xf]
                %458 = vst [vmem:[%s456] sm:$0xf] %v457
                %v459 = vld [vmem:[%s455 + $0x8] sm:$0xf]
                %460 = vst [vmem:[%s456 + $0x4] sm:$0xf] %v459
              $region89: #{tpu_custom_call.1} parent=83 // loop_footer
                %s454 = sadd.s32 1, %s450
              $region90: #{tpu_custom_call.1} parent=83 // loop_footer_branch
                %449 = sbr.rel target = $region86
              $region91: #{tpu_custom_call.1} parent=83 // loop_exit
                _
            $region84: #{tpu_custom_call.1} parent=75 // pred_fallthru
              _
          $region76: #{tpu_custom_call.1} parent=71 // pred_fallthru
            _
          %484 = vnop
        $region72: #{tpu_custom_call.1} parent=55 // pred_fallthru
          _
      $region56: #{tpu_custom_call.1} parent=5 // pred_fallthru
        _
      %p485 = scmp.le.s32.totalorder 1, %s23
      %p486 = scmp.lt.s32.totalorder %s23, 3
      %p487 = pnand %p485, %p486
      %p488 = pneg %p487
      // Predicated region
      $region110: #{tpu_custom_call.1} parent=5 // pred_check
        _
      $region111: #{tpu_custom_call.1} parent=5 // pred_check_branch
        %490 = sbr.rel (%p487) target = $region113
      $region112: #{tpu_custom_call.1} parent=5 // pred_region
        %s491 = ssub.s32 %s23, 1
        %s492 = sand.u32 %s114, 1
        %s493 = sand.u32 %s114, 1
        %s494 = smul.addr %s493, 8
        %s495 = scalar_lea.vmem [#allocation2], %s494
        // Predicated region
        $region114: #{tpu_custom_call.1} parent=112 // pred_check
          %p496 = pneg %p127
        $region115: #{tpu_custom_call.1} parent=112 // pred_check_branch
          %498 = sbr.rel (%p496) target = $region117
        $region116: #{tpu_custom_call.1} parent=112 // pred_region
          _
        $region117: #{tpu_custom_call.1} parent=112 // pred_fallthru
          _
        %p499 = scmp.lt.s32.totalorder %s28, 1
        %s500 = scalar_select %p499, %s28, 1
        %s501 = smul.addr %s500, 2
        %s502 = scalar_lea.vmem %s0, %s501
        %p503 = pneg %p49
        %p504 = pneg %p46
        %p505 = scmp.lt.s32.totalorder %s28, 1
        %s506 = scalar_select %p505, %s28, 1
        %s507 = smul.addr %s506, 2
        %s508 = scalar_lea.vmem %s1, %s507
        %p509 = pneg %p75
        %p510 = pneg %p72
        %p511 = scmp.lt.s32.totalorder %s28, 1
        %s512 = scalar_select %p511, %s28, 1
        %s513 = smul.addr %s512, 2
        %s514 = scalar_lea.vmem %s2, %s513
        %p515 = pneg %p101
        %p516 = pneg %p98
        %s517 = sand.u32 %s114, 1
        %s518 = sand.u32 %s114, 1
        %s519 = smul.addr %s518, 8
        %s520 = scalar_lea.vmem [#allocation2], %s519
        %p521 = pneg %p127
        %p522 = pneg %p124
        %p523 = pneg %p148
        %p524 = pneg %p145
        %p525 = pneg %p169
        %p526 = pneg %p166
        %p527 = pneg %p190
        %p528 = pneg %p187
        %p529 = pneg %p211
        %p530 = pneg %p208
        %p531 = pneg %p232
        %p532 = pneg %p229
        %p533 = pneg %p253
        %p534 = pneg %p250
        %p535 = pneg %p274
        %p536 = pneg %p271
        %p537 = pneg %p295
        %p538 = pneg %p292
        %p539 = pneg %p316
        %p540 = pneg %p313
        %p541 = pneg %p337
        %p542 = pneg %p334
        %p543 = pneg %p363
        %p544 = pneg %p360
        %s545 = sand.u32 %s350, 1
        %s546 = scalar_lea.sflag [#allocation4], %s545
        %s547 = sand.u32 %s350, 1
        %s548 = smul.addr %s547, 4
        %s549 = scalar_lea.vmem [#allocation3], %s548
        %p550 = scmp.lt.s32.totalorder %s28, 1
        %s551 = scalar_select %p550, %s28, 1
        %s552 = smul.addr %s551, 2
        %s553 = scalar_lea.vmem %s0, %s552
        %p554 = scmp.lt.s32.totalorder %s28, 1
        %s555 = scalar_select %p554, %s28, 1
        %s556 = smul.addr %s555, 2
        %s557 = scalar_lea.vmem %s1, %s556
        %p558 = scmp.lt.s32.totalorder %s28, 1
        %s559 = scalar_select %p558, %s28, 1
        %s560 = smul.addr %s559, 2
        %s561 = scalar_lea.vmem %s2, %s560
        %v563 = vld [vmem:[%s553] sm:$0x3]
        %v564 = vld [vmem:[%s557] sm:$0x3]
        %v565 = vld [vmem:[%s561] sm:$0x3]
        %v566 = vld [vmem:[%s495] sm:$0xf]
        %v567 = vld [vmem:[%s495 + $0x4] sm:$0xf]
        %v568 = vld [vmem:[%s4] sm:$0xf]
        %v569 = vld [vmem:[%s4 + $0x4] sm:$0xf]
        %v570 = vld [vmem:[%s4 + $0x8] sm:$0xf]
        %v571 = vld [vmem:[%s4 + $0xc] sm:$0xf]
        %v572 = vld [vmem:[%s5] sm:$0xf]
        %v573 = vld [vmem:[%s5 + $0x4] sm:$0xf]
        %v574 = vld [vmem:[%s5 + $0x8] sm:$0xf]
        %v575 = vld [vmem:[%s5 + $0xc] sm:$0xf]
        %v576 = vld [vmem:[%s6] sm:$0xf]
        %v577 = vld [vmem:[%s6 + $0x4] sm:$0xf]
        %v578 = vld [vmem:[%s6 + $0x8] sm:$0xf]
        %v579 = vld [vmem:[%s6 + $0xc] sm:$0xf]
        %v580 = vld [vmem:[%s7] sm:$0xf]
        %v581 = vld [vmem:[%s7 + $0x4] sm:$0xf]
        %v582 = vld [vmem:[%s7 + $0x8] sm:$0xf]
        %v583 = vld [vmem:[%s7 + $0xc] sm:$0xf]
        %v584 = vld [vmem:[%s9] sm:$0xff]
        %v585 = vld [vmem:[%s9 + $0x8] sm:$0xff]
        %v586 = vld [vmem:[%s9 + $0x10] sm:$0xff]
        %v587 = vld [vmem:[%s9 + $0x18] sm:$0xff]
        %v588 = vld [vmem:[%s10] sm:$0xf]
        %v589 = vld [vmem:[%s10 + $0x4] sm:$0xf]
        %v590 = vld [vmem:[%s10 + $0x8] sm:$0xf]
        %v591 = vld [vmem:[%s10 + $0xc] sm:$0xf]
        %v592 = vld [vmem:[%s11] sm:$0xff]
        %v593 = vld [vmem:[%s11 + $0x8] sm:$0xff]
        %v594 = vld [vmem:[%s11 + $0x10] sm:$0xff]
        %v595 = vld [vmem:[%s11 + $0x18] sm:$0xff]
        %v596 = vld [vmem:[%s12] sm:$0x3]
        %v597 = vld [vmem:[%s13] sm:$0x7]
        %v602 = vunpack.c.l.b16 %v572
        %v603 = vunpack.c.l.b16 %v573
        %v604 = vunpack.c.l.b16 %v574
        %v605 = vunpack.c.l.b16 %v575
        %v606 = vpack.c.b16 %v603, %v602
        %v607 = vpack.c.b16 %v605, %v604
        %vm608 = vcmask 23552
        %v610 = vsel %vm608, %v606, 0
        %v613 = vsel %vm608, %v607, 0
        %vm615 = vcmask 1040384
        %vm616 = vcmask 1041408
        %v617 = vsel %vm615, 4294967295, 65535
        %v618 = vsel %vm616, %v617, 0
        %v620 = vand.u32 %v564, %v618
        %622 = vmatprep.subr.bf16.mxu0 0
        %623 = vmatpush1.bf16.msra.mxu0 %v620
        %624 = vmatprep.subr.bf16.mxu0 0
        %625 = vmatpush1.bf16.msra.mxu0 0
        %626 = vmatprep.subr.bf16.mxu0 0
        %627 = vmatpush1.bf16.msra.mxu0 0
        %628 = vmatprep.subr.bf16.mxu0 0
        %629 = vmatpush1.bf16.msra.mxu0 0
        %630 = vmatprep.subr.bf16.mxu0 0
        %631 = vmatpush1.bf16.msra.mxu0 0
        %632 = vmatprep.subr.bf16.mxu0 0
        %633 = vmatpush1.bf16.msra.mxu0 0
        %634 = vmatprep.subr.bf16.mxu0 0
        %635 = vmatpush1.bf16.msra.mxu0 0
        %636 = vmatprep.subr.bf16.mxu0 0
        %637 = vmatpush1.bf16.msra.mxu0 0
        %638 = vmatprep.subr.bf16.mxu0 0
        %639 = vmatpush1.bf16.msra.mxu0 0
        %640 = vmatprep.subr.bf16.mxu0 0
        %641 = vmatpush1.bf16.msra.mxu0 0
        %642 = vmatprep.subr.bf16.mxu0 0
        %643 = vmatpush1.bf16.msra.mxu0 0
        %644 = vmatprep.subr.bf16.mxu0 0
        %645 = vmatpush1.bf16.msra.mxu0 0
        %646 = vmatprep.subr.bf16.mxu0 0
        %647 = vmatpush1.bf16.msra.mxu0 0
        %648 = vmatprep.subr.bf16.mxu0 0
        %649 = vmatpush1.bf16.msra.mxu0 0
        %650 = vmatprep.subr.bf16.mxu0 0
        %651 = vmatpush1.bf16.msra.mxu0 0
        %652 = vmatprep.subr.bf16.mxu0 0
        %653 = vmatpush1.bf16.msra.mxu0 0
        %654 = vmatprep.mubr.bf16.mxu0 0
        %655 = vmatmul.mubr.bf16.gmra.mrb[0].mxu0 %v610
        %v656 = vpop.f32.mrb[0].mxu0
        %v657 = vadd.f32 0.0, %v656
        %v658 = vpop.f32.mrb[0].mxu0
        %v659 = vpop.f32.mrb[0].mxu0
        %v660 = vadd.f32 0.0, %v659
        %v661 = vpop.f32.mrb[0].mxu0
        %662 = vmatprep.mubr.bf16.mxu0 0
        %663 = vmatmul.mubr.bf16.gmra.mrb[0].mxu0 %v613
        %v664 = vpop.f32.mrb[0].mxu0
        %v665 = vadd.f32 0.0, %v664
        %v666 = vpop.f32.mrb[0].mxu0
        %v667 = vpop.f32.mrb[0].mxu0
        %v668 = vadd.f32 0.0, %v667
        %v669 = vpop.f32.mrb[0].mxu0
        %670 = vdwg.mxu0
        %v675 = vunpack.c.l.b16 %v568
        %v676 = vunpack.c.l.b16 %v569
        %v677 = vunpack.c.l.b16 %v570
        %v678 = vunpack.c.l.b16 %v571
        %v679 = vpack.c.b16 %v676, %v675
        %v680 = vpack.c.b16 %v678, %v677
        %v682 = vsel %vm608, %v679, 0
        %v685 = vsel %vm608, %v680, 0
        %v688 = vand.u32 %v563, %v618
        %690 = vmatprep.subr.bf16.mxu0 0
        %691 = vmatpush1.bf16.msra.mxu0 %v688
        %692 = vmatprep.subr.bf16.mxu0 0
        %693 = vmatpush1.bf16.msra.mxu0 0
        %694 = vmatprep.subr.bf16.mxu0 0
        %695 = vmatpush1.bf16.msra.mxu0 0
        %696 = vmatprep.subr.bf16.mxu0 0
        %697 = vmatpush1.bf16.msra.mxu0 0
        %698 = vmatprep.subr.bf16.mxu0 0
        %699 = vmatpush1.bf16.msra.mxu0 0
        %700 = vmatprep.subr.bf16.mxu0 0
        %701 = vmatpush1.bf16.msra.mxu0 0
        %702 = vmatprep.subr.bf16.mxu0 0
        %703 = vmatpush1.bf16.msra.mxu0 0
        %704 = vmatprep.subr.bf16.mxu0 0
        %705 = vmatpush1.bf16.msra.mxu0 0
        %706 = vmatprep.subr.bf16.mxu0 0
        %707 = vmatpush1.bf16.msra.mxu0 0
        %708 = vmatprep.subr.bf16.mxu0 0
        %709 = vmatpush1.bf16.msra.mxu0 0
        %710 = vmatprep.subr.bf16.mxu0 0
        %711 = vmatpush1.bf16.msra.mxu0 0
        %712 = vmatprep.subr.bf16.mxu0 0
        %713 = vmatpush1.bf16.msra.mxu0 0
        %714 = vmatprep.subr.bf16.mxu0 0
        %715 = vmatpush1.bf16.msra.mxu0 0
        %716 = vmatprep.subr.bf16.mxu0 0
        %717 = vmatpush1.bf16.msra.mxu0 0
        %718 = vmatprep.subr.bf16.mxu0 0
        %719 = vmatpush1.bf16.msra.mxu0 0
        %720 = vmatprep.subr.bf16.mxu0 0
        %721 = vmatpush1.bf16.msra.mxu0 0
        %722 = vmatprep.mubr.bf16.mxu0 0
        %723 = vmatmul.mubr.bf16.gmra.mrb[0].mxu0 %v682
        %v724 = vpop.f32.mrb[0].mxu0
        %v725 = vadd.f32 %v657, %v724
        %v726 = vpop.f32.mrb[0].mxu0
        %v727 = vpop.f32.mrb[0].mxu0
        %v728 = vadd.f32 %v660, %v727
        %v729 = vpop.f32.mrb[0].mxu0
        %730 = vmatprep.mubr.bf16.mxu0 0
        %731 = vmatmul.mubr.bf16.gmra.mrb[0].mxu0 %v685
        %v732 = vpop.f32.mrb[0].mxu0
        %v733 = vadd.f32 %v665, %v732
        %v734 = vpop.f32.mrb[0].mxu0
        %v735 = vpop.f32.mrb[0].mxu0
        %v736 = vadd.f32 %v668, %v735
        %v737 = vpop.f32.mrb[0].mxu0
        %738 = vdwg.mxu0
        %v743 = vunpack.c.l.b16 %v576
        %v744 = vunpack.c.l.b16 %v577
        %v745 = vunpack.c.l.b16 %v578
        %v746 = vunpack.c.l.b16 %v579
        %v747 = vpack.c.b16 %v744, %v743
        %v748 = vpack.c.b16 %v746, %v745
        %v750 = vsel %vm608, %v747, 0
        %v753 = vsel %vm608, %v748, 0
        %v756 = vand.u32 %v565, %v618
        %758 = vmatprep.subr.bf16.mxu0 0
        %759 = vmatpush1.bf16.msra.mxu0 %v756
        %760 = vmatprep.subr.bf16.mxu0 0
        %761 = vmatpush1.bf16.msra.mxu0 0
        %762 = vmatprep.subr.bf16.mxu0 0
        %763 = vmatpush1.bf16.msra.mxu0 0
        %764 = vmatprep.subr.bf16.mxu0 0
        %765 = vmatpush1.bf16.msra.mxu0 0
        %766 = vmatprep.subr.bf16.mxu0 0
        %767 = vmatpush1.bf16.msra.mxu0 0
        %768 = vmatprep.subr.bf16.mxu0 0
        %769 = vmatpush1.bf16.msra.mxu0 0
        %770 = vmatprep.subr.bf16.mxu0 0
        %771 = vmatpush1.bf16.msra.mxu0 0
        %772 = vmatprep.subr.bf16.mxu0 0
        %773 = vmatpush1.bf16.msra.mxu0 0
        %774 = vmatprep.subr.bf16.mxu0 0
        %775 = vmatpush1.bf16.msra.mxu0 0
        %776 = vmatprep.subr.bf16.mxu0 0
        %777 = vmatpush1.bf16.msra.mxu0 0
        %778 = vmatprep.subr.bf16.mxu0 0
        %779 = vmatpush1.bf16.msra.mxu0 0
        %780 = vmatprep.subr.bf16.mxu0 0
        %781 = vmatpush1.bf16.msra.mxu0 0
        %782 = vmatprep.subr.bf16.mxu0 0
        %783 = vmatpush1.bf16.msra.mxu0 0
        %784 = vmatprep.subr.bf16.mxu0 0
        %785 = vmatpush1.bf16.msra.mxu0 0
        %786 = vmatprep.subr.bf16.mxu0 0
        %787 = vmatpush1.bf16.msra.mxu0 0
        %788 = vmatprep.subr.bf16.mxu0 0
        %789 = vmatpush1.bf16.msra.mxu0 0
        %790 = vmatprep.mubr.bf16.mxu0 0
        %791 = vmatmul.mubr.bf16.gmra.mrb[0].mxu0 %v750
        %v792 = vpop.f32.mrb[0].mxu0
        %v793 = vadd.f32 0.0, %v792
        %v794 = vpop.f32.mrb[0].mxu0
        %v795 = vpop.f32.mrb[0].mxu0
        %v796 = vadd.f32 0.0, %v795
        %v797 = vpop.f32.mrb[0].mxu0
        %798 = vmatprep.mubr.bf16.mxu0 0
        %799 = vmatmul.mubr.bf16.gmra.mrb[0].mxu0 %v753
        %v800 = vpop.f32.mrb[0].mxu0
        %v801 = vadd.f32 0.0, %v800
        %v802 = vpop.f32.mrb[0].mxu0
        %v803 = vpop.f32.mrb[0].mxu0
        %v804 = vadd.f32 0.0, %v803
        %v805 = vpop.f32.mrb[0].mxu0
        %806 = vdwg.mxu0
        %v807 = vadd.f32 %v725, %v793
        %v808 = vadd.f32 %v728, %v796
        %v809 = vadd.f32 %v733, %v801
        %v810 = vadd.f32 %v736, %v804
        %v815 = vunpack.c.l.b16 %v580
        %v816 = vunpack.c.l.b16 %v581
        %v817 = vunpack.c.l.b16 %v582
        %v818 = vunpack.c.l.b16 %v583
        %v819 = vpack.c.b16 %v816, %v815
        %v820 = vpack.c.b16 %v818, %v817
        %v823 = vunpack.c.l.b16 %v566
        %v824 = vunpack.c.l.b16 %v567
        %v825 = vpack.c.b16 %v824, %v823
        %vm827 = vcmask 130048
        %v829 = vsel %vm827, %v819, 0
        %v832 = vsel %vm827, %v820, 0
        %834 = vmatprep.subr.bf16.mxu0 0
        %835 = vmatpush1.bf16.msra.mxu0 %v825
        %836 = vmatprep.subr.bf16.mxu0 0
        %837 = vmatpush1.bf16.msra.mxu0 0
        %838 = vmatprep.subr.bf16.mxu0 0
        %839 = vmatpush1.bf16.msra.mxu0 0
        %840 = vmatprep.subr.bf16.mxu0 0
        %841 = vmatpush1.bf16.msra.mxu0 0
        %842 = vmatprep.subr.bf16.mxu0 0
        %843 = vmatpush1.bf16.msra.mxu0 0
        %844 = vmatprep.subr.bf16.mxu0 0
        %845 = vmatpush1.bf16.msra.mxu0 0
        %846 = vmatprep.subr.bf16.mxu0 0
        %847 = vmatpush1.bf16.msra.mxu0 0
        %848 = vmatprep.subr.bf16.mxu0 0
        %849 = vmatpush1.bf16.msra.mxu0 0
        %850 = vmatprep.subr.bf16.mxu0 0
        %851 = vmatpush1.bf16.msra.mxu0 0
        %852 = vmatprep.subr.bf16.mxu0 0
        %853 = vmatpush1.bf16.msra.mxu0 0
        %854 = vmatprep.subr.bf16.mxu0 0
        %855 = vmatpush1.bf16.msra.mxu0 0
        %856 = vmatprep.subr.bf16.mxu0 0
        %857 = vmatpush1.bf16.msra.mxu0 0
        %858 = vmatprep.subr.bf16.mxu0 0
        %859 = vmatpush1.bf16.msra.mxu0 0
        %860 = vmatprep.subr.bf16.mxu0 0
        %861 = vmatpush1.bf16.msra.mxu0 0
        %862 = vmatprep.subr.bf16.mxu0 0
        %863 = vmatpush1.bf16.msra.mxu0 0
        %864 = vmatprep.subr.bf16.mxu0 0
        %865 = vmatpush1.bf16.msra.mxu0 0
        %866 = vmatprep.mubr.bf16.mxu0 0
        %867 = vmatmul.mubr.bf16.gmra.mrb[0].mxu0 %v829
        %v868 = vpop.f32.mrb[0].mxu0
        %v869 = vadd.f32 0.0, %v868
        %v870 = vpop.f32.mrb[0].mxu0
        %v871 = vpop.f32.mrb[0].mxu0
        %v872 = vadd.f32 0.0, %v871
        %v873 = vpop.f32.mrb[0].mxu0
        %874 = vmatprep.mubr.bf16.mxu0 0
        %875 = vmatmul.mubr.bf16.gmra.mrb[0].mxu0 %v832
        %v876 = vpop.f32.mrb[0].mxu0
        %v877 = vadd.f32 0.0, %v876
        %v878 = vpop.f32.mrb[0].mxu0
        %v879 = vpop.f32.mrb[0].mxu0
        %v880 = vadd.f32 0.0, %v879
        %v881 = vpop.f32.mrb[0].mxu0
        %882 = vdwg.mxu0
        %v883 = vadd.f32 %v807, %v869
        %v884 = vadd.f32 %v808, %v872
        %v885 = vadd.f32 %v809, %v877
        %v886 = vadd.f32 %v810, %v880
        %v887 = vunpack.c.l.bf16 %v564
        %v888 = vand.u32 2147483647, %v887
        %vm889 = vcmp.le.f32.partialorder %v888, 0.7853982
        %vm890 = vcmp.lt.s32.totalorder %v887, 0
        %v891 = vand.u32 %v887, 2139095040
        %v892 = vshrl.u32 %v891, 23
        %v893 = vsub.s32 %v892, 127
        %v894 = vand.u32 2147483647, %v887
        %v895 = vand.u32 %v894, 8388607
        %v896 = vor.u32 %v895, 8388608
        %v897 = vsub.s32 0, %v896
        %v898 = vadd.s32 %v893, 1
        %vm899 = vcmp.gt.s32.totalorder %v898, 0
        %v900 = vsel %vm899, %v898, 0
        %v901 = vshrl.u32 %v900, 5
        %v902 = vand.u32 %v900, 31
        %v903 = vsub.s32 32, %v902
        %v904 = vshrl.u32 683565275, %v903
        %v905 = vshll.u32 683565275, %v902
        %v906 = vshrl.u32 2475754826, %v903
        %v907 = vor.u32 %v905, %v906
        %v908 = vshll.u32 2475754826, %v902
        %v909 = vshrl.u32 2131351028, %v903
        %v910 = vor.u32 %v908, %v909
        %v911 = vshll.u32 2131351028, %v902
        %v912 = vshrl.u32 2102212464, %v903
        %v913 = vor.u32 %v911, %v912
        %v914 = vshll.u32 2102212464, %v902
        %v915 = vshrl.u32 920167782, %v903
        %v916 = vor.u32 %v914, %v915
        %v917 = vshll.u32 920167782, %v902
        %v918 = vshrl.u32 1326507024, %v903
        %v919 = vor.u32 %v917, %v918
        %vm920 = vcmp.lt.s32.totalorder %v901, 1
        %vm921 = vcmp.lt.s32.totalorder %v901, 2
        %vm922 = vcmp.lt.s32.totalorder %v901, 3
        %vm923 = vcmp.lt.s32.totalorder %v901, 4
        %v924 = vsel %vm920, %v904, %v907
        %v925 = vsel %vm923, %v913, 2102212464
        %v926 = vsel %vm922, %v910, %v925
        %v927 = vsel %vm921, %v924, %v926
        %v928 = vsel %vm920, %v907, %v910
        %v929 = vsel %vm923, %v916, 920167782
        %v930 = vsel %vm922, %v913, %v929
        %v931 = vsel %vm921, %v928, %v930
        %v932 = vsel %vm920, %v910, %v913
        %v933 = vsel %vm923, %v919, 1326507024
        %v934 = vsel %vm922, %v916, %v933
        %v935 = vsel %vm921, %v932, %v934
        %v936 = vshll.u32 %v896, 8
        %v937 = vmul.u32.u64.compose %v936, %v935
        %v938 = vextract.low.u32 %v937
        %v939 = vextract.high.u32 %v937
        %v940 = vmul.u32.u64.compose %v936, %v931
        %v941 = vextract.low.u32 %v940
        %v942 = vextract.high.u32 %v940
        %v943 = vmul.u32 %v936, %v927
        %v944 = vadd.s32 %v939, %v941
        %vm945 = vc.u32 %v939, %v941
        %v946 = vadd.s32 %v942, 1
        %v947 = vsel %vm945, %v946, %v942
        %v948 = vadd.s32 %v943, %v947
        %v949 = vadd.s32 %v948, 536870912
        %v950 = vshrl.u32 %v949, 30
        %v951 = vshll.u32 %v950, 30
        %v952 = vsub.s32 %v948, %v951
        %vm953 = vcmp.lt.s32.totalorder %v952, 0
        %v954 = vsub.s32 0, %v952
        %v955 = vsel %vm953, %v954, %v952
        %v956 = vclz %v955
        %v957 = vsub.s32 %v956, 2
        %vm958 = vcmp.gt.s32.totalorder 0, %v957
        %v959 = vsel %vm958, 0, %v957
        %v960 = vsub.s32 32, %v959
        %v961 = vshll.u32 %v952, %v959
        %v962 = vshrl.u32 %v944, %v960
        %v963 = vor.u32 %v961, %v962
        %v964 = vsub.s32 4294967266, %v959
        %v965 = vadd.s32 %v964, 127
        %v966 = vshll.u32 %v965, 23
        %v967 = vor.u32 4788187, %v966
        %v968 = vand.u32 2147483647, %v967
        %v970 = vcvt.s32.f32 %v963
        %v971 = vmul.f32 %v970, %v968
        %v972 = vxor.u32 %v971, 2147483648
        %v973 = vsel %vm890, %v972, %v971
        %v974 = vsub.s32 4, %v950
        %v975 = vsel %vm890, %v974, %v950
        %v976 = vsel %vm889, %v887, %v973
        %v977 = vsel %vm889, 0, %v975
        %v978 = vcosq.f32.pop %v976
        %v979 = vsinq.f32.pop %v976
        %vm980 = vweird.f32 %v887
        %v981 = vadd.s32 %v977, 3
        %v982 = vand.u32 %v981, 3
        %vm983 = vcmp.lt.s32.totalorder %v982, 2
        %vm984 = vcmp.eq.s32.totalorder %v982, 0
        %v985 = vxor.u32 %v979, 2147483648
        %v986 = vsel %vm984, %v978, %v985
        %vm987 = vcmp.eq.s32.totalorder %v982, 2
        %v988 = vxor.u32 %v978, 2147483648
        %v989 = vsel %vm987, %v988, %v979
        %v990 = vsel %vm983, %v986, %v989
        %v991 = vsel %vm980, nan, %v990
        %v992 = vpack.c.bf16 %v991, %v991
        %v993 = vand.u32 2147483647, %v887
        %vm994 = vcmp.le.f32.partialorder %v993, 0.7853982
        %vm995 = vcmp.lt.s32.totalorder %v887, 0
        %v996 = vand.u32 %v887, 2139095040
        %v997 = vshrl.u32 %v996, 23
        %v998 = vsub.s32 %v997, 127
        %v999 = vand.u32 2147483647, %v887
        %v1000 = vand.u32 %v999, 8388607
        %v1001 = vor.u32 %v1000, 8388608
        %v1002 = vsub.s32 0, %v1001
        %v1003 = vadd.s32 %v998, 1
        %vm1004 = vcmp.gt.s32.totalorder %v1003, 0
        %v1005 = vsel %vm1004, %v1003, 0
        %v1006 = vshrl.u32 %v1005, 5
        %v1007 = vand.u32 %v1005, 31
        %v1008 = vsub.s32 32, %v1007
        %v1009 = vshrl.u32 683565275, %v1008
        %v1010 = vshll.u32 683565275, %v1007
        %v1011 = vshrl.u32 2475754826, %v1008
        %v1012 = vor.u32 %v1010, %v1011
        %v1013 = vshll.u32 2475754826, %v1007
        %v1014 = vshrl.u32 2131351028, %v1008
        %v1015 = vor.u32 %v1013, %v1014
        %v1016 = vshll.u32 2131351028, %v1007
        %v1017 = vshrl.u32 2102212464, %v1008
        %v1018 = vor.u32 %v1016, %v1017
        %v1019 = vshll.u32 2102212464, %v1007
        %v1020 = vshrl.u32 920167782, %v1008
        %v1021 = vor.u32 %v1019, %v1020
        %v1022 = vshll.u32 920167782, %v1007
        %v1023 = vshrl.u32 1326507024, %v1008
        %v1024 = vor.u32 %v1022, %v1023
        %vm1025 = vcmp.lt.s32.totalorder %v1006, 1
        %vm1026 = vcmp.lt.s32.totalorder %v1006, 2
        %vm1027 = vcmp.lt.s32.totalorder %v1006, 3
        %vm1028 = vcmp.lt.s32.totalorder %v1006, 4
        %v1029 = vsel %vm1025, %v1009, %v1012
        %v1030 = vsel %vm1028, %v1018, 2102212464
        %v1031 = vsel %vm1027, %v1015, %v1030
        %v1032 = vsel %vm1026, %v1029, %v1031
        %v1033 = vsel %vm1025, %v1012, %v1015
        %v1034 = vsel %vm1028, %v1021, 920167782
        %v1035 = vsel %vm1027, %v1018, %v1034
        %v1036 = vsel %vm1026, %v1033, %v1035
        %v1037 = vsel %vm1025, %v1015, %v1018
        %v1038 = vsel %vm1028, %v1024, 1326507024
        %v1039 = vsel %vm1027, %v1021, %v1038
        %v1040 = vsel %vm1026, %v1037, %v1039
        %v1041 = vshll.u32 %v1001, 8
        %v1042 = vmul.u32.u64.compose %v1041, %v1040
        %v1043 = vextract.low.u32 %v1042
        %v1044 = vextract.high.u32 %v1042
        %v1045 = vmul.u32.u64.compose %v1041, %v1036
        %v1046 = vextract.low.u32 %v1045
        %v1047 = vextract.high.u32 %v1045
        %v1048 = vmul.u32 %v1041, %v1032
        %v1049 = vadd.s32 %v1044, %v1046
        %vm1050 = vc.u32 %v1044, %v1046
        %v1051 = vadd.s32 %v1047, 1
        %v1052 = vsel %vm1050, %v1051, %v1047
        %v1053 = vadd.s32 %v1048, %v1052
        %v1054 = vadd.s32 %v1053, 536870912
        %v1055 = vshrl.u32 %v1054, 30
        %v1056 = vshll.u32 %v1055, 30
        %v1057 = vsub.s32 %v1053, %v1056
        %vm1058 = vcmp.lt.s32.totalorder %v1057, 0
        %v1059 = vsub.s32 0, %v1057
        %v1060 = vsel %vm1058, %v1059, %v1057
        %v1061 = vclz %v1060
        %v1062 = vsub.s32 %v1061, 2
        %vm1063 = vcmp.gt.s32.totalorder 0, %v1062
        %v1064 = vsel %vm1063, 0, %v1062
        %v1065 = vsub.s32 32, %v1064
        %v1066 = vshll.u32 %v1057, %v1064
        %v1067 = vshrl.u32 %v1049, %v1065
        %v1068 = vor.u32 %v1066, %v1067
        %v1069 = vsub.s32 4294967266, %v1064
        %v1070 = vadd.s32 %v1069, 127
        %v1071 = vshll.u32 %v1070, 23
        %v1072 = vor.u32 4788187, %v1071
        %v1073 = vand.u32 2147483647, %v1072
        %v1075 = vcvt.s32.f32 %v1068
        %v1076 = vmul.f32 %v1075, %v1073
        %v1077 = vxor.u32 %v1076, 2147483648
        %v1078 = vsel %vm995, %v1077, %v1076
        %v1079 = vsub.s32 4, %v1055
        %v1080 = vsel %vm995, %v1079, %v1055
        %v1081 = vsel %vm994, %v887, %v1078
        %v1082 = vsel %vm994, 0, %v1080
        %v1083 = vcosq.f32.pop %v1081
        %v1084 = vsinq.f32.pop %v1081
        %vm1085 = vweird.f32 %v887
        %v1086 = vand.u32 %v1082, 3
        %vm1087 = vcmp.lt.s32.totalorder %v1086, 2
        %vm1088 = vcmp.eq.s32.totalorder %v1086, 0
        %v1089 = vxor.u32 %v1084, 2147483648
        %v1090 = vsel %vm1088, %v1083, %v1089
        %vm1091 = vcmp.eq.s32.totalorder %v1086, 2
        %v1092 = vxor.u32 %v1083, 2147483648
        %v1093 = vsel %vm1091, %v1092, %v1084
        %v1094 = vsel %vm1087, %v1090, %v1093
        %v1095 = vsel %vm1085, nan, %v1094
        %v1096 = vpack.c.bf16 %v1095, %v1095
        %v1097 = vld [vmem:[%s8] sm:$0xf]
        %v1098 = vld [vmem:[%s8 + $0x4] sm:$0xf]
        %v1099 = vld [vmem:[%s8 + $0x8] sm:$0xf]
        %v1100 = vld [vmem:[%s8 + $0xc] sm:$0xf]
        %v1105 = vunpack.c.l.b16 %v1097
        %v1106 = vunpack.c.l.b16 %v1098
        %v1107 = vunpack.c.l.b16 %v1099
        %v1108 = vunpack.c.l.b16 %v1100
        %v1109 = vpack.c.b16 %v1106, %v1105
        %v1110 = vpack.c.b16 %v1108, %v1107
        %v1112 = vsel %vm608, %v1109, 0
        %v1115 = vsel %vm608, %v1110, 0
        %v1118 = vand.u32 %v992, %v618
        %1120 = vmatprep.subr.bf16.mxu0 0
        %1121 = vmatpush1.bf16.msra.mxu0 %v1118
        %1122 = vmatprep.subr.bf16.mxu0 0
        %1123 = vmatpush1.bf16.msra.mxu0 0
        %1124 = vmatprep.subr.bf16.mxu0 0
        %1125 = vmatpush1.bf16.msra.mxu0 0
        %1126 = vmatprep.subr.bf16.mxu0 0
        %1127 = vmatpush1.bf16.msra.mxu0 0
        %1128 = vmatprep.subr.bf16.mxu0 0
        %1129 = vmatpush1.bf16.msra.mxu0 0
        %1130 = vmatprep.subr.bf16.mxu0 0
        %1131 = vmatpush1.bf16.msra.mxu0 0
        %1132 = vmatprep.subr.bf16.mxu0 0
        %1133 = vmatpush1.bf16.msra.mxu0 0
        %1134 = vmatprep.subr.bf16.mxu0 0
        %1135 = vmatpush1.bf16.msra.mxu0 0
        %1136 = vmatprep.subr.bf16.mxu0 0
        %1137 = vmatpush1.bf16.msra.mxu0 0
        %1138 = vmatprep.subr.bf16.mxu0 0
        %1139 = vmatpush1.bf16.msra.mxu0 0
        %1140 = vmatprep.subr.bf16.mxu0 0
        %1141 = vmatpush1.bf16.msra.mxu0 0
        %1142 = vmatprep.subr.bf16.mxu0 0
        %1143 = vmatpush1.bf16.msra.mxu0 0
        %1144 = vmatprep.subr.bf16.mxu0 0
        %1145 = vmatpush1.bf16.msra.mxu0 0
        %1146 = vmatprep.subr.bf16.mxu0 0
        %1147 = vmatpush1.bf16.msra.mxu0 0
        %1148 = vmatprep.subr.bf16.mxu0 0
        %1149 = vmatpush1.bf16.msra.mxu0 0
        %1150 = vmatprep.subr.bf16.mxu0 0
        %1151 = vmatpush1.bf16.msra.mxu0 0
        %1152 = vmatprep.mubr.bf16.mxu0 0
        %1153 = vmatmul.mubr.bf16.gmra.mrb[0].mxu0 %v1112
        %v1154 = vpop.f32.mrb[0].mxu0
        %v1155 = vadd.f32 0.0, %v1154
        %v1156 = vpop.f32.mrb[0].mxu0
        %v1157 = vpop.f32.mrb[0].mxu0
        %v1158 = vadd.f32 0.0, %v1157
        %v1159 = vpop.f32.mrb[0].mxu0
        %1160 = vmatprep.mubr.bf16.mxu0 0
        %1161 = vmatmul.mubr.bf16.gmra.mrb[0].mxu0 %v1115
        %v1162 = vpop.f32.mrb[0].mxu0
        %v1163 = vadd.f32 0.0, %v1162
        %v1164 = vpop.f32.mrb[0].mxu0
        %v1165 = vpop.f32.mrb[0].mxu0
        %v1166 = vadd.f32 0.0, %v1165
        %v1167 = vpop.f32.mrb[0].mxu0
        %1168 = vdwg.mxu0
        %v1169 = vadd.f32 %v883, %v1155
        %v1170 = vadd.f32 %v884, %v1158
        %v1171 = vadd.f32 %v885, %v1163
        %v1172 = vadd.f32 %v886, %v1166
        %s1173 = scalar_lea.vmem %s8, 16
        %v1174 = vld [vmem:[%s1173] sm:$0xf]
        %v1175 = vld [vmem:[%s1173 + $0x4] sm:$0xf]
        %v1176 = vld [vmem:[%s1173 + $0x8] sm:$0xf]
        %v1177 = vld [vmem:[%s1173 + $0xc] sm:$0xf]
        %v1182 = vunpack.c.l.b16 %v1174
        %v1183 = vunpack.c.l.b16 %v1175
        %v1184 = vunpack.c.l.b16 %v1176
        %v1185 = vunpack.c.l.b16 %v1177
        %v1186 = vpack.c.b16 %v1183, %v1182
        %v1187 = vpack.c.b16 %v1185, %v1184
        %v1189 = vsel %vm608, %v1186, 0
        %v1192 = vsel %vm608, %v1187, 0
        %v1195 = vand.u32 %v1096, %v618
        %1197 = vmatprep.subr.bf16.mxu0 0
        %1198 = vmatpush1.bf16.msra.mxu0 %v1195
        %1199 = vmatprep.subr.bf16.mxu0 0
        %1200 = vmatpush1.bf16.msra.mxu0 0
        %1201 = vmatprep.subr.bf16.mxu0 0
        %1202 = vmatpush1.bf16.msra.mxu0 0
        %1203 = vmatprep.subr.bf16.mxu0 0
        %1204 = vmatpush1.bf16.msra.mxu0 0
        %1205 = vmatprep.subr.bf16.mxu0 0
        %1206 = vmatpush1.bf16.msra.mxu0 0
        %1207 = vmatprep.subr.bf16.mxu0 0
        %1208 = vmatpush1.bf16.msra.mxu0 0
        %1209 = vmatprep.subr.bf16.mxu0 0
        %1210 = vmatpush1.bf16.msra.mxu0 0
        %1211 = vmatprep.subr.bf16.mxu0 0
        %1212 = vmatpush1.bf16.msra.mxu0 0
        %1213 = vmatprep.subr.bf16.mxu0 0
        %1214 = vmatpush1.bf16.msra.mxu0 0
        %1215 = vmatprep.subr.bf16.mxu0 0
        %1216 = vmatpush1.bf16.msra.mxu0 0
        %1217 = vmatprep.subr.bf16.mxu0 0
        %1218 = vmatpush1.bf16.msra.mxu0 0
        %1219 = vmatprep.subr.bf16.mxu0 0
        %1220 = vmatpush1.bf16.msra.mxu0 0
        %1221 = vmatprep.subr.bf16.mxu0 0
        %1222 = vmatpush1.bf16.msra.mxu0 0
        %1223 = vmatprep.subr.bf16.mxu0 0
        %1224 = vmatpush1.bf16.msra.mxu0 0
        %1225 = vmatprep.subr.bf16.mxu0 0
        %1226 = vmatpush1.bf16.msra.mxu0 0
        %1227 = vmatprep.subr.bf16.mxu0 0
        %1228 = vmatpush1.bf16.msra.mxu0 0
        %1229 = vmatprep.mubr.bf16.mxu0 0
        %1230 = vmatmul.mubr.bf16.gmra.mrb[0].mxu0 %v1189
        %v1231 = vpop.f32.mrb[0].mxu0
        %v1232 = vadd.f32 0.0, %v1231
        %v1233 = vpop.f32.mrb[0].mxu0
        %v1234 = vpop.f32.mrb[0].mxu0
        %v1235 = vadd.f32 0.0, %v1234
        %v1236 = vpop.f32.mrb[0].mxu0
        %1237 = vmatprep.mubr.bf16.mxu0 0
        %1238 = vmatmul.mubr.bf16.gmra.mrb[0].mxu0 %v1192
        %v1239 = vpop.f32.mrb[0].mxu0
        %v1240 = vadd.f32 0.0, %v1239
        %v1241 = vpop.f32.mrb[0].mxu0
        %v1242 = vpop.f32.mrb[0].mxu0
        %v1243 = vadd.f32 0.0, %v1242
        %v1244 = vpop.f32.mrb[0].mxu0
        %1245 = vdwg.mxu0
        %v1246 = vadd.f32 %v1169, %v1232
        %v1247 = vadd.f32 %v1170, %v1235
        %v1248 = vadd.f32 %v1171, %v1240
        %v1249 = vadd.f32 %v1172, %v1243
        %v1250 = vmul.f32 %v887, 2.0
        %v1251 = vand.u32 2147483647, %v1250
        %vm1252 = vcmp.le.f32.partialorder %v1251, 0.7853982
        %vm1253 = vcmp.lt.s32.totalorder %v1250, 0
        %v1254 = vand.u32 %v1250, 2139095040
        %v1255 = vshrl.u32 %v1254, 23
        %v1256 = vsub.s32 %v1255, 127
        %v1257 = vand.u32 2147483647, %v1250
        %v1258 = vand.u32 %v1257, 8388607
        %v1259 = vor.u32 %v1258, 8388608
        %v1260 = vsub.s32 0, %v1259
        %v1261 = vadd.s32 %v1256, 1
        %vm1262 = vcmp.gt.s32.totalorder %v1261, 0
        %v1263 = vsel %vm1262, %v1261, 0
        %v1264 = vshrl.u32 %v1263, 5
        %v1265 = vand.u32 %v1263, 31
        %v1266 = vsub.s32 32, %v1265
        %v1267 = vshrl.u32 683565275, %v1266
        %v1268 = vshll.u32 683565275, %v1265
        %v1269 = vshrl.u32 2475754826, %v1266
        %v1270 = vor.u32 %v1268, %v1269
        %v1271 = vshll.u32 2475754826, %v1265
        %v1272 = vshrl.u32 2131351028, %v1266
        %v1273 = vor.u32 %v1271, %v1272
        %v1274 = vshll.u32 2131351028, %v1265
        %v1275 = vshrl.u32 2102212464, %v1266
        %v1276 = vor.u32 %v1274, %v1275
        %v1277 = vshll.u32 2102212464, %v1265
        %v1278 = vshrl.u32 920167782, %v1266
        %v1279 = vor.u32 %v1277, %v1278
        %v1280 = vshll.u32 920167782, %v1265
        %v1281 = vshrl.u32 1326507024, %v1266
        %v1282 = vor.u32 %v1280, %v1281
        %vm1283 = vcmp.lt.s32.totalorder %v1264, 1
        %vm1284 = vcmp.lt.s32.totalorder %v1264, 2
        %vm1285 = vcmp.lt.s32.totalorder %v1264, 3
        %vm1286 = vcmp.lt.s32.totalorder %v1264, 4
        %v1287 = vsel %vm1283, %v1267, %v1270
        %v1288 = vsel %vm1286, %v1276, 2102212464
        %v1289 = vsel %vm1285, %v1273, %v1288
        %v1290 = vsel %vm1284, %v1287, %v1289
        %v1291 = vsel %vm1283, %v1270, %v1273
        %v1292 = vsel %vm1286, %v1279, 920167782
        %v1293 = vsel %vm1285, %v1276, %v1292
        %v1294 = vsel %vm1284, %v1291, %v1293
        %v1295 = vsel %vm1283, %v1273, %v1276
        %v1296 = vsel %vm1286, %v1282, 1326507024
        %v1297 = vsel %vm1285, %v1279, %v1296
        %v1298 = vsel %vm1284, %v1295, %v1297
        %v1299 = vshll.u32 %v1259, 8
        %v1300 = vmul.u32.u64.compose %v1299, %v1298
        %v1301 = vextract.low.u32 %v1300
        %v1302 = vextract.high.u32 %v1300
        %v1303 = vmul.u32.u64.compose %v1299, %v1294
        %v1304 = vextract.low.u32 %v1303
        %v1305 = vextract.high.u32 %v1303
        %v1306 = vmul.u32 %v1299, %v1290
        %v1307 = vadd.s32 %v1302, %v1304
        %vm1308 = vc.u32 %v1302, %v1304
        %v1309 = vadd.s32 %v1305, 1
        %v1310 = vsel %vm1308, %v1309, %v1305
        %v1311 = vadd.s32 %v1306, %v1310
        %v1312 = vadd.s32 %v1311, 536870912
        %v1313 = vshrl.u32 %v1312, 30
        %v1314 = vshll.u32 %v1313, 30
        %v1315 = vsub.s32 %v1311, %v1314
        %vm1316 = vcmp.lt.s32.totalorder %v1315, 0
        %v1317 = vsub.s32 0, %v1315
        %v1318 = vsel %vm1316, %v1317, %v1315
        %v1319 = vclz %v1318
        %v1320 = vsub.s32 %v1319, 2
        %vm1321 = vcmp.gt.s32.totalorder 0, %v1320
        %v1322 = vsel %vm1321, 0, %v1320
        %v1323 = vsub.s32 32, %v1322
        %v1324 = vshll.u32 %v1315, %v1322
        %v1325 = vshrl.u32 %v1307, %v1323
        %v1326 = vor.u32 %v1324, %v1325
        %v1327 = vsub.s32 4294967266, %v1322
        %v1328 = vadd.s32 %v1327, 127
        %v1329 = vshll.u32 %v1328, 23
        %v1330 = vor.u32 4788187, %v1329
        %v1331 = vand.u32 2147483647, %v1330
        %v1333 = vcvt.s32.f32 %v1326
        %v1334 = vmul.f32 %v1333, %v1331
        %v1335 = vxor.u32 %v1334, 2147483648
        %v1336 = vsel %vm1253, %v1335, %v1334
        %v1337 = vsub.s32 4, %v1313
        %v1338 = vsel %vm1253, %v1337, %v1313
        %v1339 = vsel %vm1252, %v1250, %v1336
        %v1340 = vsel %vm1252, 0, %v1338
        %v1341 = vcosq.f32.pop %v1339
        %v1342 = vsinq.f32.pop %v1339
        %vm1343 = vweird.f32 %v1250
        %v1344 = vadd.s32 %v1340, 3
        %v1345 = vand.u32 %v1344, 3
        %vm1346 = vcmp.lt.s32.totalorder %v1345, 2
        %vm1347 = vcmp.eq.s32.totalorder %v1345, 0
        %v1348 = vxor.u32 %v1342, 2147483648
        %v1349 = vsel %vm1347, %v1341, %v1348
        %vm1350 = vcmp.eq.s32.totalorder %v1345, 2
        %v1351 = vxor.u32 %v1341, 2147483648
        %v1352 = vsel %vm1350, %v1351, %v1342
        %v1353 = vsel %vm1346, %v1349, %v1352
        %v1354 = vsel %vm1343, nan, %v1353
        %v1355 = vpack.c.bf16 %v1354, %v1354
        %v1356 = vand.u32 2147483647, %v1250
        %vm1357 = vcmp.le.f32.partialorder %v1356, 0.7853982
        %vm1358 = vcmp.lt.s32.totalorder %v1250, 0
        %v1359 = vand.u32 %v1250, 2139095040
        %v1360 = vshrl.u32 %v1359, 23
        %v1361 = vsub.s32 %v1360, 127
        %v1362 = vand.u32 2147483647, %v1250
        %v1363 = vand.u32 %v1362, 8388607
        %v1364 = vor.u32 %v1363, 8388608
        %v1365 = vsub.s32 0, %v1364
        %v1366 = vadd.s32 %v1361, 1
        %vm1367 = vcmp.gt.s32.totalorder %v1366, 0
        %v1368 = vsel %vm1367, %v1366, 0
        %v1369 = vshrl.u32 %v1368, 5
        %v1370 = vand.u32 %v1368, 31
        %v1371 = vsub.s32 32, %v1370
        %v1372 = vshrl.u32 683565275, %v1371
        %v1373 = vshll.u32 683565275, %v1370
        %v1374 = vshrl.u32 2475754826, %v1371
        %v1375 = vor.u32 %v1373, %v1374
        %v1376 = vshll.u32 2475754826, %v1370
        %v1377 = vshrl.u32 2131351028, %v1371
        %v1378 = vor.u32 %v1376, %v1377
        %v1379 = vshll.u32 2131351028, %v1370
        %v1380 = vshrl.u32 2102212464, %v1371
        %v1381 = vor.u32 %v1379, %v1380
        %v1382 = vshll.u32 2102212464, %v1370
        %v1383 = vshrl.u32 920167782, %v1371
        %v1384 = vor.u32 %v1382, %v1383
        %v1385 = vshll.u32 920167782, %v1370
        %v1386 = vshrl.u32 1326507024, %v1371
        %v1387 = vor.u32 %v1385, %v1386
        %vm1388 = vcmp.lt.s32.totalorder %v1369, 1
        %vm1389 = vcmp.lt.s32.totalorder %v1369, 2
        %vm1390 = vcmp.lt.s32.totalorder %v1369, 3
        %vm1391 = vcmp.lt.s32.totalorder %v1369, 4
        %v1392 = vsel %vm1388, %v1372, %v1375
        %v1393 = vsel %vm1391, %v1381, 2102212464
        %v1394 = vsel %vm1390, %v1378, %v1393
        %v1395 = vsel %vm1389, %v1392, %v1394
        %v1396 = vsel %vm1388, %v1375, %v1378
        %v1397 = vsel %vm1391, %v1384, 920167782
        %v1398 = vsel %vm1390, %v1381, %v1397
        %v1399 = vsel %vm1389, %v1396, %v1398
        %v1400 = vsel %vm1388, %v1378, %v1381
        %v1401 = vsel %vm1391, %v1387, 1326507024
        %v1402 = vsel %vm1390, %v1384, %v1401
        %v1403 = vsel %vm1389, %v1400, %v1402
        %v1404 = vshll.u32 %v1364, 8
        %v1405 = vmul.u32.u64.compose %v1404, %v1403
        %v1406 = vextract.low.u32 %v1405
        %v1407 = vextract.high.u32 %v1405
        %v1408 = vmul.u32.u64.compose %v1404, %v1399
        %v1409 = vextract.low.u32 %v1408
        %v1410 = vextract.high.u32 %v1408
        %v1411 = vmul.u32 %v1404, %v1395
        %v1412 = vadd.s32 %v1407, %v1409
        %vm1413 = vc.u32 %v1407, %v1409
        %v1414 = vadd.s32 %v1410, 1
        %v1415 = vsel %vm1413, %v1414, %v1410
        %v1416 = vadd.s32 %v1411, %v1415
        %v1417 = vadd.s32 %v1416, 536870912
        %v1418 = vshrl.u32 %v1417, 30
        %v1419 = vshll.u32 %v1418, 30
        %v1420 = vsub.s32 %v1416, %v1419
        %vm1421 = vcmp.lt.s32.totalorder %v1420, 0
        %v1422 = vsub.s32 0, %v1420
        %v1423 = vsel %vm1421, %v1422, %v1420
        %v1424 = vclz %v1423
        %v1425 = vsub.s32 %v1424, 2
        %vm1426 = vcmp.gt.s32.totalorder 0, %v1425
        %v1427 = vsel %vm1426, 0, %v1425
        %v1428 = vsub.s32 32, %v1427
        %v1429 = vshll.u32 %v1420, %v1427
        %v1430 = vshrl.u32 %v1412, %v1428
        %v1431 = vor.u32 %v1429, %v1430
        %v1432 = vsub.s32 4294967266, %v1427
        %v1433 = vadd.s32 %v1432, 127
        %v1434 = vshll.u32 %v1433, 23
        %v1435 = vor.u32 4788187, %v1434
        %v1436 = vand.u32 2147483647, %v1435
        %v1438 = vcvt.s32.f32 %v1431
        %v1439 = vmul.f32 %v1438, %v1436
        %v1440 = vxor.u32 %v1439, 2147483648
        %v1441 = vsel %vm1358, %v1440, %v1439
        %v1442 = vsub.s32 4, %v1418
        %v1443 = vsel %vm1358, %v1442, %v1418
        %v1444 = vsel %vm1357, %v1250, %v1441
        %v1445 = vsel %vm1357, 0, %v1443
        %v1446 = vcosq.f32.pop %v1444
        %v1447 = vsinq.f32.pop %v1444
        %vm1448 = vweird.f32 %v1250
        %v1449 = vand.u32 %v1445, 3
        %vm1450 = vcmp.lt.s32.totalorder %v1449, 2
        %vm1451 = vcmp.eq.s32.totalorder %v1449, 0
        %v1452 = vxor.u32 %v1447, 2147483648
        %v1453 = vsel %vm1451, %v1446, %v1452
        %vm1454 = vcmp.eq.s32.totalorder %v1449, 2
        %v1455 = vxor.u32 %v1446, 2147483648
        %v1456 = vsel %vm1454, %v1455, %v1447
        %v1457 = vsel %vm1450, %v1453, %v1456
        %v1458 = vsel %vm1448, nan, %v1457
        %v1459 = vpack.c.bf16 %v1458, %v1458
        %s1460 = scalar_lea.vmem %s8, 32
        %v1461 = vld [vmem:[%s1460] sm:$0xf]
        %v1462 = vld [vmem:[%s1460 + $0x4] sm:$0xf]
        %v1463 = vld [vmem:[%s1460 + $0x8] sm:$0xf]
        %v1464 = vld [vmem:[%s1460 + $0xc] sm:$0xf]
        %v1469 = vunpack.c.l.b16 %v1461
        %v1470 = vunpack.c.l.b16 %v1462
        %v1471 = vunpack.c.l.b16 %v1463
        %v1472 = vunpack.c.l.b16 %v1464
        %v1473 = vpack.c.b16 %v1470, %v1469
        %v1474 = vpack.c.b16 %v1472, %v1471
        %v1476 = vsel %vm608, %v1473, 0
        %v1479 = vsel %vm608, %v1474, 0
        %v1482 = vand.u32 %v1355, %v618
        %1484 = vmatprep.subr.bf16.mxu0 0
        %1485 = vmatpush1.bf16.msra.mxu0 %v1482
        %1486 = vmatprep.subr.bf16.mxu0 0
        %1487 = vmatpush1.bf16.msra.mxu0 0
        %1488 = vmatprep.subr.bf16.mxu0 0
        %1489 = vmatpush1.bf16.msra.mxu0 0
        %1490 = vmatprep.subr.bf16.mxu0 0
        %1491 = vmatpush1.bf16.msra.mxu0 0
        %1492 = vmatprep.subr.bf16.mxu0 0
        %1493 = vmatpush1.bf16.msra.mxu0 0
        %1494 = vmatprep.subr.bf16.mxu0 0
        %1495 = vmatpush1.bf16.msra.mxu0 0
        %1496 = vmatprep.subr.bf16.mxu0 0
        %1497 = vmatpush1.bf16.msra.mxu0 0
        %1498 = vmatprep.subr.bf16.mxu0 0
        %1499 = vmatpush1.bf16.msra.mxu0 0
        %1500 = vmatprep.subr.bf16.mxu0 0
        %1501 = vmatpush1.bf16.msra.mxu0 0
        %1502 = vmatprep.subr.bf16.mxu0 0
        %1503 = vmatpush1.bf16.msra.mxu0 0
        %1504 = vmatprep.subr.bf16.mxu0 0
        %1505 = vmatpush1.bf16.msra.mxu0 0
        %1506 = vmatprep.subr.bf16.mxu0 0
        %1507 = vmatpush1.bf16.msra.mxu0 0
        %1508 = vmatprep.subr.bf16.mxu0 0
        %1509 = vmatpush1.bf16.msra.mxu0 0
        %1510 = vmatprep.subr.bf16.mxu0 0
        %1511 = vmatpush1.bf16.msra.mxu0 0
        %1512 = vmatprep.subr.bf16.mxu0 0
        %1513 = vmatpush1.bf16.msra.mxu0 0
        %1514 = vmatprep.subr.bf16.mxu0 0
        %1515 = vmatpush1.bf16.msra.mxu0 0
        %1516 = vmatprep.mubr.bf16.mxu0 0
        %1517 = vmatmul.mubr.bf16.gmra.mrb[0].mxu0 %v1476
        %v1518 = vpop.f32.mrb[0].mxu0
        %v1519 = vadd.f32 0.0, %v1518
        %v1520 = vpop.f32.mrb[0].mxu0
        %v1521 = vpop.f32.mrb[0].mxu0
        %v1522 = vadd.f32 0.0, %v1521
        %v1523 = vpop.f32.mrb[0].mxu0
        %1524 = vmatprep.mubr.bf16.mxu0 0
        %1525 = vmatmul.mubr.bf16.gmra.mrb[0].mxu0 %v1479
        %v1526 = vpop.f32.mrb[0].mxu0
        %v1527 = vadd.f32 0.0, %v1526
        %v1528 = vpop.f32.mrb[0].mxu0
        %v1529 = vpop.f32.mrb[0].mxu0
        %v1530 = vadd.f32 0.0, %v1529
        %v1531 = vpop.f32.mrb[0].mxu0
        %1532 = vdwg.mxu0
        %v1533 = vadd.f32 %v1246, %v1519
        %v1534 = vadd.f32 %v1247, %v1522
        %v1535 = vadd.f32 %v1248, %v1527
        %v1536 = vadd.f32 %v1249, %v1530
        %s1537 = scalar_lea.vmem %s8, 48
        %v1538 = vld [vmem:[%s1537] sm:$0xf]
        %v1539 = vld [vmem:[%s1537 + $0x4] sm:$0xf]
        %v1540 = vld [vmem:[%s1537 + $0x8] sm:$0xf]
        %v1541 = vld [vmem:[%s1537 + $0xc] sm:$0xf]
        %v1546 = vunpack.c.l.b16 %v1538
        %v1547 = vunpack.c.l.b16 %v1539
        %v1548 = vunpack.c.l.b16 %v1540
        %v1549 = vunpack.c.l.b16 %v1541
        %v1550 = vpack.c.b16 %v1547, %v1546
        %v1551 = vpack.c.b16 %v1549, %v1548
        %v1553 = vsel %vm608, %v1550, 0
        %v1556 = vsel %vm608, %v1551, 0
        %v1559 = vand.u32 %v1459, %v618
        %1561 = vmatprep.subr.bf16.mxu0 0
        %1562 = vmatpush1.bf16.msra.mxu0 %v1559
        %1563 = vmatprep.subr.bf16.mxu0 0
        %1564 = vmatpush1.bf16.msra.mxu0 0
        %1565 = vmatprep.subr.bf16.mxu0 0
        %1566 = vmatpush1.bf16.msra.mxu0 0
        %1567 = vmatprep.subr.bf16.mxu0 0
        %1568 = vmatpush1.bf16.msra.mxu0 0
        %1569 = vmatprep.subr.bf16.mxu0 0
        %1570 = vmatpush1.bf16.msra.mxu0 0
        %1571 = vmatprep.subr.bf16.mxu0 0
        %1572 = vmatpush1.bf16.msra.mxu0 0
        %1573 = vmatprep.subr.bf16.mxu0 0
        %1574 = vmatpush1.bf16.msra.mxu0 0
        %1575 = vmatprep.subr.bf16.mxu0 0
        %1576 = vmatpush1.bf16.msra.mxu0 0
        %1577 = vmatprep.subr.bf16.mxu0 0
        %1578 = vmatpush1.bf16.msra.mxu0 0
        %1579 = vmatprep.subr.bf16.mxu0 0
        %1580 = vmatpush1.bf16.msra.mxu0 0
        %1581 = vmatprep.subr.bf16.mxu0 0
        %1582 = vmatpush1.bf16.msra.mxu0 0
        %1583 = vmatprep.subr.bf16.mxu0 0
        %1584 = vmatpush1.bf16.msra.mxu0 0
        %1585 = vmatprep.subr.bf16.mxu0 0
        %1586 = vmatpush1.bf16.msra.mxu0 0
        %1587 = vmatprep.subr.bf16.mxu0 0
        %1588 = vmatpush1.bf16.msra.mxu0 0
        %1589 = vmatprep.subr.bf16.mxu0 0
        %1590 = vmatpush1.bf16.msra.mxu0 0
        %1591 = vmatprep.subr.bf16.mxu0 0
        %1592 = vmatpush1.bf16.msra.mxu0 0
        %1593 = vmatprep.mubr.bf16.mxu0 0
        %1594 = vmatmul.mubr.bf16.gmra.mrb[0].mxu0 %v1553
        %v1595 = vpop.f32.mrb[0].mxu0
        %v1596 = vadd.f32 0.0, %v1595
        %v1597 = vpop.f32.mrb[0].mxu0
        %v1598 = vpop.f32.mrb[0].mxu0
        %v1599 = vadd.f32 0.0, %v1598
        %v1600 = vpop.f32.mrb[0].mxu0
        %1601 = vmatprep.mubr.bf16.mxu0 0
        %1602 = vmatmul.mubr.bf16.gmra.mrb[0].mxu0 %v1556
        %v1603 = vpop.f32.mrb[0].mxu0
        %v1604 = vadd.f32 0.0, %v1603
        %v1605 = vpop.f32.mrb[0].mxu0
        %v1606 = vpop.f32.mrb[0].mxu0
        %v1607 = vadd.f32 0.0, %v1606
        %v1608 = vpop.f32.mrb[0].mxu0
        %1609 = vdwg.mxu0
        %v1610 = vadd.f32 %v1533, %v1596
        %v1611 = vadd.f32 %v1534, %v1599
        %v1612 = vadd.f32 %v1535, %v1604
        %v1613 = vadd.f32 %v1536, %v1607
        %v1614 = vmul.f32 %v887, 4.0
        %v1615 = vand.u32 2147483647, %v1614
        %vm1616 = vcmp.le.f32.partialorder %v1615, 0.7853982
        %vm1617 = vcmp.lt.s32.totalorder %v1614, 0
        %v1618 = vand.u32 %v1614, 2139095040
        %v1619 = vshrl.u32 %v1618, 23
        %v1620 = vsub.s32 %v1619, 127
        %v1621 = vand.u32 2147483647, %v1614
        %v1622 = vand.u32 %v1621, 8388607
        %v1623 = vor.u32 %v1622, 8388608
        %v1624 = vsub.s32 0, %v1623
        %v1625 = vadd.s32 %v1620, 1
        %vm1626 = vcmp.gt.s32.totalorder %v1625, 0
        %v1627 = vsel %vm1626, %v1625, 0
        %v1628 = vshrl.u32 %v1627, 5
        %v1629 = vand.u32 %v1627, 31
        %v1630 = vsub.s32 32, %v1629
        %v1631 = vshrl.u32 683565275, %v1630
        %v1632 = vshll.u32 683565275, %v1629
        %v1633 = vshrl.u32 2475754826, %v1630
        %v1634 = vor.u32 %v1632, %v1633
        %v1635 = vshll.u32 2475754826, %v1629
        %v1636 = vshrl.u32 2131351028, %v1630
        %v1637 = vor.u32 %v1635, %v1636
        %v1638 = vshll.u32 2131351028, %v1629
        %v1639 = vshrl.u32 2102212464, %v1630
        %v1640 = vor.u32 %v1638, %v1639
        %v1641 = vshll.u32 2102212464, %v1629
        %v1642 = vshrl.u32 920167782, %v1630
        %v1643 = vor.u32 %v1641, %v1642
        %v1644 = vshll.u32 920167782, %v1629
        %v1645 = vshrl.u32 1326507024, %v1630
        %v1646 = vor.u32 %v1644, %v1645
        %vm1647 = vcmp.lt.s32.totalorder %v1628, 1
        %vm1648 = vcmp.lt.s32.totalorder %v1628, 2
        %vm1649 = vcmp.lt.s32.totalorder %v1628, 3
        %vm1650 = vcmp.lt.s32.totalorder %v1628, 4
        %v1651 = vsel %vm1647, %v1631, %v1634
        %v1652 = vsel %vm1650, %v1640, 2102212464
        %v1653 = vsel %vm1649, %v1637, %v1652
        %v1654 = vsel %vm1648, %v1651, %v1653
        %v1655 = vsel %vm1647, %v1634, %v1637
        %v1656 = vsel %vm1650, %v1643, 920167782
        %v1657 = vsel %vm1649, %v1640, %v1656
        %v1658 = vsel %vm1648, %v1655, %v1657
        %v1659 = vsel %vm1647, %v1637, %v1640
        %v1660 = vsel %vm1650, %v1646, 1326507024
        %v1661 = vsel %vm1649, %v1643, %v1660
        %v1662 = vsel %vm1648, %v1659, %v1661
        %v1663 = vshll.u32 %v1623, 8
        %v1664 = vmul.u32.u64.compose %v1663, %v1662
        %v1665 = vextract.low.u32 %v1664
        %v1666 = vextract.high.u32 %v1664
        %v1667 = vmul.u32.u64.compose %v1663, %v1658
        %v1668 = vextract.low.u32 %v1667
        %v1669 = vextract.high.u32 %v1667
        %v1670 = vmul.u32 %v1663, %v1654
        %v1671 = vadd.s32 %v1666, %v1668
        %vm1672 = vc.u32 %v1666, %v1668
        %v1673 = vadd.s32 %v1669, 1
        %v1674 = vsel %vm1672, %v1673, %v1669
        %v1675 = vadd.s32 %v1670, %v1674
        %v1676 = vadd.s32 %v1675, 536870912
        %v1677 = vshrl.u32 %v1676, 30
        %v1678 = vshll.u32 %v1677, 30
        %v1679 = vsub.s32 %v1675, %v1678
        %vm1680 = vcmp.lt.s32.totalorder %v1679, 0
        %v1681 = vsub.s32 0, %v1679
        %v1682 = vsel %vm1680, %v1681, %v1679
        %v1683 = vclz %v1682
        %v1684 = vsub.s32 %v1683, 2
        %vm1685 = vcmp.gt.s32.totalorder 0, %v1684
        %v1686 = vsel %vm1685, 0, %v1684
        %v1687 = vsub.s32 32, %v1686
        %v1688 = vshll.u32 %v1679, %v1686
        %v1689 = vshrl.u32 %v1671, %v1687
        %v1690 = vor.u32 %v1688, %v1689
        %v1691 = vsub.s32 4294967266, %v1686
        %v1692 = vadd.s32 %v1691, 127
        %v1693 = vshll.u32 %v1692, 23
        %v1694 = vor.u32 4788187, %v1693
        %v1695 = vand.u32 2147483647, %v1694
        %v1697 = vcvt.s32.f32 %v1690
        %v1698 = vmul.f32 %v1697, %v1695
        %v1699 = vxor.u32 %v1698, 2147483648
        %v1700 = vsel %vm1617, %v1699, %v1698
        %v1701 = vsub.s32 4, %v1677
        %v1702 = vsel %vm1617, %v1701, %v1677
        %v1703 = vsel %vm1616, %v1614, %v1700
        %v1704 = vsel %vm1616, 0, %v1702
        %v1705 = vcosq.f32.pop %v1703
        %v1706 = vsinq.f32.pop %v1703
        %vm1707 = vweird.f32 %v1614
        %v1708 = vadd.s32 %v1704, 3
        %v1709 = vand.u32 %v1708, 3
        %vm1710 = vcmp.lt.s32.totalorder %v1709, 2
        %vm1711 = vcmp.eq.s32.totalorder %v1709, 0
        %v1712 = vxor.u32 %v1706, 2147483648
        %v1713 = vsel %vm1711, %v1705, %v1712
        %vm1714 = vcmp.eq.s32.totalorder %v1709, 2
        %v1715 = vxor.u32 %v1705, 2147483648
        %v1716 = vsel %vm1714, %v1715, %v1706
        %v1717 = vsel %vm1710, %v1713, %v1716
        %v1718 = vsel %vm1707, nan, %v1717
        %v1719 = vpack.c.bf16 %v1718, %v1718
        %v1720 = vand.u32 2147483647, %v1614
        %vm1721 = vcmp.le.f32.partialorder %v1720, 0.7853982
        %vm1722 = vcmp.lt.s32.totalorder %v1614, 0
        %v1723 = vand.u32 %v1614, 2139095040
        %v1724 = vshrl.u32 %v1723, 23
        %v1725 = vsub.s32 %v1724, 127
        %v1726 = vand.u32 2147483647, %v1614
        %v1727 = vand.u32 %v1726, 8388607
        %v1728 = vor.u32 %v1727, 8388608
        %v1729 = vsub.s32 0, %v1728
        %v1730 = vadd.s32 %v1725, 1
        %vm1731 = vcmp.gt.s32.totalorder %v1730, 0
        %v1732 = vsel %vm1731, %v1730, 0
        %v1733 = vshrl.u32 %v1732, 5
        %v1734 = vand.u32 %v1732, 31
        %v1735 = vsub.s32 32, %v1734
        %v1736 = vshrl.u32 683565275, %v1735
        %v1737 = vshll.u32 683565275, %v1734
        %v1738 = vshrl.u32 2475754826, %v1735
        %v1739 = vor.u32 %v1737, %v1738
        %v1740 = vshll.u32 2475754826, %v1734
        %v1741 = vshrl.u32 2131351028, %v1735
        %v1742 = vor.u32 %v1740, %v1741
        %v1743 = vshll.u32 2131351028, %v1734
        %v1744 = vshrl.u32 2102212464, %v1735
        %v1745 = vor.u32 %v1743, %v1744
        %v1746 = vshll.u32 2102212464, %v1734
        %v1747 = vshrl.u32 920167782, %v1735
        %v1748 = vor.u32 %v1746, %v1747
        %v1749 = vshll.u32 920167782, %v1734
        %v1750 = vshrl.u32 1326507024, %v1735
        %v1751 = vor.u32 %v1749, %v1750
        %vm1752 = vcmp.lt.s32.totalorder %v1733, 1
        %vm1753 = vcmp.lt.s32.totalorder %v1733, 2
        %vm1754 = vcmp.lt.s32.totalorder %v1733, 3
        %vm1755 = vcmp.lt.s32.totalorder %v1733, 4
        %v1756 = vsel %vm1752, %v1736, %v1739
        %v1757 = vsel %vm1755, %v1745, 2102212464
        %v1758 = vsel %vm1754, %v1742, %v1757
        %v1759 = vsel %vm1753, %v1756, %v1758
        %v1760 = vsel %vm1752, %v1739, %v1742
        %v1761 = vsel %vm1755, %v1748, 920167782
        %v1762 = vsel %vm1754, %v1745, %v1761
        %v1763 = vsel %vm1753, %v1760, %v1762
        %v1764 = vsel %vm1752, %v1742, %v1745
        %v1765 = vsel %vm1755, %v1751, 1326507024
        %v1766 = vsel %vm1754, %v1748, %v1765
        %v1767 = vsel %vm1753, %v1764, %v1766
        %v1768 = vshll.u32 %v1728, 8
        %v1769 = vmul.u32.u64.compose %v1768, %v1767
        %v1770 = vextract.low.u32 %v1769
        %v1771 = vextract.high.u32 %v1769
        %v1772 = vmul.u32.u64.compose %v1768, %v1763
        %v1773 = vextract.low.u32 %v1772
        %v1774 = vextract.high.u32 %v1772
        %v1775 = vmul.u32 %v1768, %v1759
        %v1776 = vadd.s32 %v1771, %v1773
        %vm1777 = vc.u32 %v1771, %v1773
        %v1778 = vadd.s32 %v1774, 1
        %v1779 = vsel %vm1777, %v1778, %v1774
        %v1780 = vadd.s32 %v1775, %v1779
        %v1781 = vadd.s32 %v1780, 536870912
        %v1782 = vshrl.u32 %v1781, 30
        %v1783 = vshll.u32 %v1782, 30
        %v1784 = vsub.s32 %v1780, %v1783
        %vm1785 = vcmp.lt.s32.totalorder %v1784, 0
        %v1786 = vsub.s32 0, %v1784
        %v1787 = vsel %vm1785, %v1786, %v1784
        %v1788 = vclz %v1787
        %v1789 = vsub.s32 %v1788, 2
        %vm1790 = vcmp.gt.s32.totalorder 0, %v1789
        %v1791 = vsel %vm1790, 0, %v1789
        %v1792 = vsub.s32 32, %v1791
        %v1793 = vshll.u32 %v1784, %v1791
        %v1794 = vshrl.u32 %v1776, %v1792
        %v1795 = vor.u32 %v1793, %v1794
        %v1796 = vsub.s32 4294967266, %v1791
        %v1797 = vadd.s32 %v1796, 127
        %v1798 = vshll.u32 %v1797, 23
        %v1799 = vor.u32 4788187, %v1798
        %v1800 = vand.u32 2147483647, %v1799
        %v1802 = vcvt.s32.f32 %v1795
        %v1803 = vmul.f32 %v1802, %v1800
        %v1804 = vxor.u32 %v1803, 2147483648
        %v1805 = vsel %vm1722, %v1804, %v1803
        %v1806 = vsub.s32 4, %v1782
        %v1807 = vsel %vm1722, %v1806, %v1782
        %v1808 = vsel %vm1721, %v1614, %v1805
        %v1809 = vsel %vm1721, 0, %v1807
        %v1810 = vcosq.f32.pop %v1808
        %v1811 = vsinq.f32.pop %v1808
        %vm1812 = vweird.f32 %v1614
        %v1813 = vand.u32 %v1809, 3
        %vm1814 = vcmp.lt.s32.totalorder %v1813, 2
        %vm1815 = vcmp.eq.s32.totalorder %v1813, 0
        %v1816 = vxor.u32 %v1811, 2147483648
        %v1817 = vsel %vm1815, %v1810, %v1816
        %vm1818 = vcmp.eq.s32.totalorder %v1813, 2
        %v1819 = vxor.u32 %v1810, 2147483648
        %v1820 = vsel %vm1818, %v1819, %v1811
        %v1821 = vsel %vm1814, %v1817, %v1820
        %v1822 = vsel %vm1812, nan, %v1821
        %v1823 = vpack.c.bf16 %v1822, %v1822
        %s1824 = scalar_lea.vmem %s8, 64
        %v1825 = vld [vmem:[%s1824] sm:$0xf]
        %v1826 = vld [vmem:[%s1824 + $0x4] sm:$0xf]
        %v1827 = vld [vmem:[%s1824 + $0x8] sm:$0xf]
        %v1828 = vld [vmem:[%s1824 + $0xc] sm:$0xf]
        %v1833 = vunpack.c.l.b16 %v1825
        %v1834 = vunpack.c.l.b16 %v1826
        %v1835 = vunpack.c.l.b16 %v1827
        %v1836 = vunpack.c.l.b16 %v1828
        %v1837 = vpack.c.b16 %v1834, %v1833
        %v1838 = vpack.c.b16 %v1836, %v1835
        %v1840 = vsel %vm608, %v1837, 0
        %v1843 = vsel %vm608, %v1838, 0
        %v1846 = vand.u32 %v1719, %v618
        %1848 = vmatprep.subr.bf16.mxu0 0
        %1849 = vmatpush1.bf16.msra.mxu0 %v1846
        %1850 = vmatprep.subr.bf16.mxu0 0
        %1851 = vmatpush1.bf16.msra.mxu0 0
        %1852 = vmatprep.subr.bf16.mxu0 0
        %1853 = vmatpush1.bf16.msra.mxu0 0
        %1854 = vmatprep.subr.bf16.mxu0 0
        %1855 = vmatpush1.bf16.msra.mxu0 0
        %1856 = vmatprep.subr.bf16.mxu0 0
        %1857 = vmatpush1.bf16.msra.mxu0 0
        %1858 = vmatprep.subr.bf16.mxu0 0
        %1859 = vmatpush1.bf16.msra.mxu0 0
        %1860 = vmatprep.subr.bf16.mxu0 0
        %1861 = vmatpush1.bf16.msra.mxu0 0
        %1862 = vmatprep.subr.bf16.mxu0 0
        %1863 = vmatpush1.bf16.msra.mxu0 0
        %1864 = vmatprep.subr.bf16.mxu0 0
        %1865 = vmatpush1.bf16.msra.mxu0 0
        %1866 = vmatprep.subr.bf16.mxu0 0
        %1867 = vmatpush1.bf16.msra.mxu0 0
        %1868 = vmatprep.subr.bf16.mxu0 0
        %1869 = vmatpush1.bf16.msra.mxu0 0
        %1870 = vmatprep.subr.bf16.mxu0 0
        %1871 = vmatpush1.bf16.msra.mxu0 0
        %1872 = vmatprep.subr.bf16.mxu0 0
        %1873 = vmatpush1.bf16.msra.mxu0 0
        %1874 = vmatprep.subr.bf16.mxu0 0
        %1875 = vmatpush1.bf16.msra.mxu0 0
        %1876 = vmatprep.subr.bf16.mxu0 0
        %1877 = vmatpush1.bf16.msra.mxu0 0
        %1878 = vmatprep.subr.bf16.mxu0 0
        %1879 = vmatpush1.bf16.msra.mxu0 0
        %1880 = vmatprep.mubr.bf16.mxu0 0
        %1881 = vmatmul.mubr.bf16.gmra.mrb[0].mxu0 %v1840
        %v1882 = vpop.f32.mrb[0].mxu0
        %v1883 = vadd.f32 0.0, %v1882
        %v1884 = vpop.f32.mrb[0].mxu0
        %v1885 = vpop.f32.mrb[0].mxu0
        %v1886 = vadd.f32 0.0, %v1885
        %v1887 = vpop.f32.mrb[0].mxu0
        %1888 = vmatprep.mubr.bf16.mxu0 0
        %1889 = vmatmul.mubr.bf16.gmra.mrb[0].mxu0 %v1843
        %v1890 = vpop.f32.mrb[0].mxu0
        %v1891 = vadd.f32 0.0, %v1890
        %v1892 = vpop.f32.mrb[0].mxu0
        %v1893 = vpop.f32.mrb[0].mxu0
        %v1894 = vadd.f32 0.0, %v1893
        %v1895 = vpop.f32.mrb[0].mxu0
        %1896 = vdwg.mxu0
        %v1897 = vadd.f32 %v1610, %v1883
        %v1898 = vadd.f32 %v1611, %v1886
        %v1899 = vadd.f32 %v1612, %v1891
        %v1900 = vadd.f32 %v1613, %v1894
        %s1901 = scalar_lea.vmem %s8, 80
        %v1902 = vld [vmem:[%s1901] sm:$0xf]
        %v1903 = vld [vmem:[%s1901 + $0x4] sm:$0xf]
        %v1904 = vld [vmem:[%s1901 + $0x8] sm:$0xf]
        %v1905 = vld [vmem:[%s1901 + $0xc] sm:$0xf]
        %v1910 = vunpack.c.l.b16 %v1902
        %v1911 = vunpack.c.l.b16 %v1903
        %v1912 = vunpack.c.l.b16 %v1904
        %v1913 = vunpack.c.l.b16 %v1905
        %v1914 = vpack.c.b16 %v1911, %v1910
        %v1915 = vpack.c.b16 %v1913, %v1912
        %v1917 = vsel %vm608, %v1914, 0
        %v1920 = vsel %vm608, %v1915, 0
        %v1923 = vand.u32 %v1823, %v618
        %1925 = vmatprep.subr.bf16.mxu0 0
        %1926 = vmatpush1.bf16.msra.mxu0 %v1923
        %1927 = vmatprep.subr.bf16.mxu0 0
        %1928 = vmatpush1.bf16.msra.mxu0 0
        %1929 = vmatprep.subr.bf16.mxu0 0
        %1930 = vmatpush1.bf16.msra.mxu0 0
        %1931 = vmatprep.subr.bf16.mxu0 0
        %1932 = vmatpush1.bf16.msra.mxu0 0
        %1933 = vmatprep.subr.bf16.mxu0 0
        %1934 = vmatpush1.bf16.msra.mxu0 0
        %1935 = vmatprep.subr.bf16.mxu0 0
        %1936 = vmatpush1.bf16.msra.mxu0 0
        %1937 = vmatprep.subr.bf16.mxu0 0
        %1938 = vmatpush1.bf16.msra.mxu0 0
        %1939 = vmatprep.subr.bf16.mxu0 0
        %1940 = vmatpush1.bf16.msra.mxu0 0
        %1941 = vmatprep.subr.bf16.mxu0 0
        %1942 = vmatpush1.bf16.msra.mxu0 0
        %1943 = vmatprep.subr.bf16.mxu0 0
        %1944 = vmatpush1.bf16.msra.mxu0 0
        %1945 = vmatprep.subr.bf16.mxu0 0
        %1946 = vmatpush1.bf16.msra.mxu0 0
        %1947 = vmatprep.subr.bf16.mxu0 0
        %1948 = vmatpush1.bf16.msra.mxu0 0
        %1949 = vmatprep.subr.bf16.mxu0 0
        %1950 = vmatpush1.bf16.msra.mxu0 0
        %1951 = vmatprep.subr.bf16.mxu0 0
        %1952 = vmatpush1.bf16.msra.mxu0 0
        %1953 = vmatprep.subr.bf16.mxu0 0
        %1954 = vmatpush1.bf16.msra.mxu0 0
        %1955 = vmatprep.subr.bf16.mxu0 0
        %1956 = vmatpush1.bf16.msra.mxu0 0
        %1957 = vmatprep.mubr.bf16.mxu0 0
        %1958 = vmatmul.mubr.bf16.gmra.mrb[0].mxu0 %v1917
        %v1959 = vpop.f32.mrb[0].mxu0
        %v1960 = vadd.f32 0.0, %v1959
        %v1961 = vpop.f32.mrb[0].mxu0
        %v1962 = vpop.f32.mrb[0].mxu0
        %v1963 = vadd.f32 0.0, %v1962
        %v1964 = vpop.f32.mrb[0].mxu0
        %1965 = vmatprep.mubr.bf16.mxu0 0
        %1966 = vmatmul.mubr.bf16.gmra.mrb[0].mxu0 %v1920
        %v1967 = vpop.f32.mrb[0].mxu0
        %v1968 = vadd.f32 0.0, %v1967
        %v1969 = vpop.f32.mrb[0].mxu0
        %v1970 = vpop.f32.mrb[0].mxu0
        %v1971 = vadd.f32 0.0, %v1970
        %v1972 = vpop.f32.mrb[0].mxu0
        %1973 = vdwg.mxu0
        %v1974 = vadd.f32 %v1897, %v1960
        %v1975 = vadd.f32 %v1898, %v1963
        %v1976 = vadd.f32 %v1899, %v1968
        %v1977 = vadd.f32 %v1900, %v1971
        %v1978 = vmul.f32 %v887, 8.0
        %v1979 = vand.u32 2147483647, %v1978
        %vm1980 = vcmp.le.f32.partialorder %v1979, 0.7853982
        %vm1981 = vcmp.lt.s32.totalorder %v1978, 0
        %v1982 = vand.u32 %v1978, 2139095040
        %v1983 = vshrl.u32 %v1982, 23
        %v1984 = vsub.s32 %v1983, 127
        %v1985 = vand.u32 2147483647, %v1978
        %v1986 = vand.u32 %v1985, 8388607
        %v1987 = vor.u32 %v1986, 8388608
        %v1988 = vsub.s32 0, %v1987
        %v1989 = vadd.s32 %v1984, 1
        %vm1990 = vcmp.gt.s32.totalorder %v1989, 0
        %v1991 = vsel %vm1990, %v1989, 0
        %v1992 = vshrl.u32 %v1991, 5
        %v1993 = vand.u32 %v1991, 31
        %v1994 = vsub.s32 32, %v1993
        %v1995 = vshrl.u32 683565275, %v1994
        %v1996 = vshll.u32 683565275, %v1993
        %v1997 = vshrl.u32 2475754826, %v1994
        %v1998 = vor.u32 %v1996, %v1997
        %v1999 = vshll.u32 2475754826, %v1993
        %v2000 = vshrl.u32 2131351028, %v1994
        %v2001 = vor.u32 %v1999, %v2000
        %v2002 = vshll.u32 2131351028, %v1993
        %v2003 = vshrl.u32 2102212464, %v1994
        %v2004 = vor.u32 %v2002, %v2003
        %v2005 = vshll.u32 2102212464, %v1993
        %v2006 = vshrl.u32 920167782, %v1994
        %v2007 = vor.u32 %v2005, %v2006
        %v2008 = vshll.u32 920167782, %v1993
        %v2009 = vshrl.u32 1326507024, %v1994
        %v2010 = vor.u32 %v2008, %v2009
        %vm2011 = vcmp.lt.s32.totalorder %v1992, 1
        %vm2012 = vcmp.lt.s32.totalorder %v1992, 2
        %vm2013 = vcmp.lt.s32.totalorder %v1992, 3
        %vm2014 = vcmp.lt.s32.totalorder %v1992, 4
        %v2015 = vsel %vm2011, %v1995, %v1998
        %v2016 = vsel %vm2014, %v2004, 2102212464
        %v2017 = vsel %vm2013, %v2001, %v2016
        %v2018 = vsel %vm2012, %v2015, %v2017
        %v2019 = vsel %vm2011, %v1998, %v2001
        %v2020 = vsel %vm2014, %v2007, 920167782
        %v2021 = vsel %vm2013, %v2004, %v2020
        %v2022 = vsel %vm2012, %v2019, %v2021
        %v2023 = vsel %vm2011, %v2001, %v2004
        %v2024 = vsel %vm2014, %v2010, 1326507024
        %v2025 = vsel %vm2013, %v2007, %v2024
        %v2026 = vsel %vm2012, %v2023, %v2025
        %v2027 = vshll.u32 %v1987, 8
        %v2028 = vmul.u32.u64.compose %v2027, %v2026
        %v2029 = vextract.low.u32 %v2028
        %v2030 = vextract.high.u32 %v2028
        %v2031 = vmul.u32.u64.compose %v2027, %v2022
        %v2032 = vextract.low.u32 %v2031
        %v2033 = vextract.high.u32 %v2031
        %v2034 = vmul.u32 %v2027, %v2018
        %v2035 = vadd.s32 %v2030, %v2032
        %vm2036 = vc.u32 %v2030, %v2032
        %v2037 = vadd.s32 %v2033, 1
        %v2038 = vsel %vm2036, %v2037, %v2033
        %v2039 = vadd.s32 %v2034, %v2038
        %v2040 = vadd.s32 %v2039, 536870912
        %v2041 = vshrl.u32 %v2040, 30
        %v2042 = vshll.u32 %v2041, 30
        %v2043 = vsub.s32 %v2039, %v2042
        %vm2044 = vcmp.lt.s32.totalorder %v2043, 0
        %v2045 = vsub.s32 0, %v2043
        %v2046 = vsel %vm2044, %v2045, %v2043
        %v2047 = vclz %v2046
        %v2048 = vsub.s32 %v2047, 2
        %vm2049 = vcmp.gt.s32.totalorder 0, %v2048
        %v2050 = vsel %vm2049, 0, %v2048
        %v2051 = vsub.s32 32, %v2050
        %v2052 = vshll.u32 %v2043, %v2050
        %v2053 = vshrl.u32 %v2035, %v2051
        %v2054 = vor.u32 %v2052, %v2053
        %v2055 = vsub.s32 4294967266, %v2050
        %v2056 = vadd.s32 %v2055, 127
        %v2057 = vshll.u32 %v2056, 23
        %v2058 = vor.u32 4788187, %v2057
        %v2059 = vand.u32 2147483647, %v2058
        %v2061 = vcvt.s32.f32 %v2054
        %v2062 = vmul.f32 %v2061, %v2059
        %v2063 = vxor.u32 %v2062, 2147483648
        %v2064 = vsel %vm1981, %v2063, %v2062
        %v2065 = vsub.s32 4, %v2041
        %v2066 = vsel %vm1981, %v2065, %v2041
        %v2067 = vsel %vm1980, %v1978, %v2064
        %v2068 = vsel %vm1980, 0, %v2066
        %v2069 = vcosq.f32.pop %v2067
        %v2070 = vsinq.f32.pop %v2067
        %vm2071 = vweird.f32 %v1978
        %v2072 = vadd.s32 %v2068, 3
        %v2073 = vand.u32 %v2072, 3
        %vm2074 = vcmp.lt.s32.totalorder %v2073, 2
        %vm2075 = vcmp.eq.s32.totalorder %v2073, 0
        %v2076 = vxor.u32 %v2070, 2147483648
        %v2077 = vsel %vm2075, %v2069, %v2076
        %vm2078 = vcmp.eq.s32.totalorder %v2073, 2
        %v2079 = vxor.u32 %v2069, 2147483648
        %v2080 = vsel %vm2078, %v2079, %v2070
        %v2081 = vsel %vm2074, %v2077, %v2080
        %v2082 = vsel %vm2071, nan, %v2081
        %v2083 = vpack.c.bf16 %v2082, %v2082
        %v2084 = vand.u32 2147483647, %v1978
        %vm2085 = vcmp.le.f32.partialorder %v2084, 0.7853982
        %vm2086 = vcmp.lt.s32.totalorder %v1978, 0
        %v2087 = vand.u32 %v1978, 2139095040
        %v2088 = vshrl.u32 %v2087, 23
        %v2089 = vsub.s32 %v2088, 127
        %v2090 = vand.u32 2147483647, %v1978
        %v2091 = vand.u32 %v2090, 8388607
        %v2092 = vor.u32 %v2091, 8388608
        %v2093 = vsub.s32 0, %v2092
        %v2094 = vadd.s32 %v2089, 1
        %vm2095 = vcmp.gt.s32.totalorder %v2094, 0
        %v2096 = vsel %vm2095, %v2094, 0
        %v2097 = vshrl.u32 %v2096, 5
        %v2098 = vand.u32 %v2096, 31
        %v2099 = vsub.s32 32, %v2098
        %v2100 = vshrl.u32 683565275, %v2099
        %v2101 = vshll.u32 683565275, %v2098
        %v2102 = vshrl.u32 2475754826, %v2099
        %v2103 = vor.u32 %v2101, %v2102
        %v2104 = vshll.u32 2475754826, %v2098
        %v2105 = vshrl.u32 2131351028, %v2099
        %v2106 = vor.u32 %v2104, %v2105
        %v2107 = vshll.u32 2131351028, %v2098
        %v2108 = vshrl.u32 2102212464, %v2099
        %v2109 = vor.u32 %v2107, %v2108
        %v2110 = vshll.u32 2102212464, %v2098
        %v2111 = vshrl.u32 920167782, %v2099
        %v2112 = vor.u32 %v2110, %v2111
        %v2113 = vshll.u32 920167782, %v2098
        %v2114 = vshrl.u32 1326507024, %v2099
        %v2115 = vor.u32 %v2113, %v2114
        %vm2116 = vcmp.lt.s32.totalorder %v2097, 1
        %vm2117 = vcmp.lt.s32.totalorder %v2097, 2
        %vm2118 = vcmp.lt.s32.totalorder %v2097, 3
        %vm2119 = vcmp.lt.s32.totalorder %v2097, 4
        %v2120 = vsel %vm2116, %v2100, %v2103
        %v2121 = vsel %vm2119, %v2109, 2102212464
        %v2122 = vsel %vm2118, %v2106, %v2121
        %v2123 = vsel %vm2117, %v2120, %v2122
        %v2124 = vsel %vm2116, %v2103, %v2106
        %v2125 = vsel %vm2119, %v2112, 920167782
        %v2126 = vsel %vm2118, %v2109, %v2125
        %v2127 = vsel %vm2117, %v2124, %v2126
        %v2128 = vsel %vm2116, %v2106, %v2109
        %v2129 = vsel %vm2119, %v2115, 1326507024
        %v2130 = vsel %vm2118, %v2112, %v2129
        %v2131 = vsel %vm2117, %v2128, %v2130
        %v2132 = vshll.u32 %v2092, 8
        %v2133 = vmul.u32.u64.compose %v2132, %v2131
        %v2134 = vextract.low.u32 %v2133
        %v2135 = vextract.high.u32 %v2133
        %v2136 = vmul.u32.u64.compose %v2132, %v2127
        %v2137 = vextract.low.u32 %v2136
        %v2138 = vextract.high.u32 %v2136
        %v2139 = vmul.u32 %v2132, %v2123
        %v2140 = vadd.s32 %v2135, %v2137
        %vm2141 = vc.u32 %v2135, %v2137
        %v2142 = vadd.s32 %v2138, 1
        %v2143 = vsel %vm2141, %v2142, %v2138
        %v2144 = vadd.s32 %v2139, %v2143
        %v2145 = vadd.s32 %v2144, 536870912
        %v2146 = vshrl.u32 %v2145, 30
        %v2147 = vshll.u32 %v2146, 30
        %v2148 = vsub.s32 %v2144, %v2147
        %vm2149 = vcmp.lt.s32.totalorder %v2148, 0
        %v2150 = vsub.s32 0, %v2148
        %v2151 = vsel %vm2149, %v2150, %v2148
        %v2152 = vclz %v2151
        %v2153 = vsub.s32 %v2152, 2
        %vm2154 = vcmp.gt.s32.totalorder 0, %v2153
        %v2155 = vsel %vm2154, 0, %v2153
        %v2156 = vsub.s32 32, %v2155
        %v2157 = vshll.u32 %v2148, %v2155
        %v2158 = vshrl.u32 %v2140, %v2156
        %v2159 = vor.u32 %v2157, %v2158
        %v2160 = vsub.s32 4294967266, %v2155
        %v2161 = vadd.s32 %v2160, 127
        %v2162 = vshll.u32 %v2161, 23
        %v2163 = vor.u32 4788187, %v2162
        %v2164 = vand.u32 2147483647, %v2163
        %v2166 = vcvt.s32.f32 %v2159
        %v2167 = vmul.f32 %v2166, %v2164
        %v2168 = vxor.u32 %v2167, 2147483648
        %v2169 = vsel %vm2086, %v2168, %v2167
        %v2170 = vsub.s32 4, %v2146
        %v2171 = vsel %vm2086, %v2170, %v2146
        %v2172 = vsel %vm2085, %v1978, %v2169
        %v2173 = vsel %vm2085, 0, %v2171
        %v2174 = vcosq.f32.pop %v2172
        %v2175 = vsinq.f32.pop %v2172
        %vm2176 = vweird.f32 %v1978
        %v2177 = vand.u32 %v2173, 3
        %vm2178 = vcmp.lt.s32.totalorder %v2177, 2
        %vm2179 = vcmp.eq.s32.totalorder %v2177, 0
        %v2180 = vxor.u32 %v2175, 2147483648
        %v2181 = vsel %vm2179, %v2174, %v2180
        %vm2182 = vcmp.eq.s32.totalorder %v2177, 2
        %v2183 = vxor.u32 %v2174, 2147483648
        %v2184 = vsel %vm2182, %v2183, %v2175
        %v2185 = vsel %vm2178, %v2181, %v2184
        %v2186 = vsel %vm2176, nan, %v2185
        %v2187 = vpack.c.bf16 %v2186, %v2186
        %s2188 = scalar_lea.vmem %s8, 96
        %v2189 = vld [vmem:[%s2188] sm:$0xf]
        %v2190 = vld [vmem:[%s2188 + $0x4] sm:$0xf]
        %v2191 = vld [vmem:[%s2188 + $0x8] sm:$0xf]
        %v2192 = vld [vmem:[%s2188 + $0xc] sm:$0xf]
        %v2197 = vunpack.c.l.b16 %v2189
        %v2198 = vunpack.c.l.b16 %v2190
        %v2199 = vunpack.c.l.b16 %v2191
        %v2200 = vunpack.c.l.b16 %v2192
        %v2201 = vpack.c.b16 %v2198, %v2197
        %v2202 = vpack.c.b16 %v2200, %v2199
        %v2204 = vsel %vm608, %v2201, 0
        %v2207 = vsel %vm608, %v2202, 0
        %v2210 = vand.u32 %v2083, %v618
        %2212 = vmatprep.subr.bf16.mxu0 0
        %2213 = vmatpush1.bf16.msra.mxu0 %v2210
        %2214 = vmatprep.subr.bf16.mxu0 0
        %2215 = vmatpush1.bf16.msra.mxu0 0
        %2216 = vmatprep.subr.bf16.mxu0 0
        %2217 = vmatpush1.bf16.msra.mxu0 0
        %2218 = vmatprep.subr.bf16.mxu0 0
        %2219 = vmatpush1.bf16.msra.mxu0 0
        %2220 = vmatprep.subr.bf16.mxu0 0
        %2221 = vmatpush1.bf16.msra.mxu0 0
        %2222 = vmatprep.subr.bf16.mxu0 0
        %2223 = vmatpush1.bf16.msra.mxu0 0
        %2224 = vmatprep.subr.bf16.mxu0 0
        %2225 = vmatpush1.bf16.msra.mxu0 0
        %2226 = vmatprep.subr.bf16.mxu0 0
        %2227 = vmatpush1.bf16.msra.mxu0 0
        %2228 = vmatprep.subr.bf16.mxu0 0
        %2229 = vmatpush1.bf16.msra.mxu0 0
        %2230 = vmatprep.subr.bf16.mxu0 0
        %2231 = vmatpush1.bf16.msra.mxu0 0
        %2232 = vmatprep.subr.bf16.mxu0 0
        %2233 = vmatpush1.bf16.msra.mxu0 0
        %2234 = vmatprep.subr.bf16.mxu0 0
        %2235 = vmatpush1.bf16.msra.mxu0 0
        %2236 = vmatprep.subr.bf16.mxu0 0
        %2237 = vmatpush1.bf16.msra.mxu0 0
        %2238 = vmatprep.subr.bf16.mxu0 0
        %2239 = vmatpush1.bf16.msra.mxu0 0
        %2240 = vmatprep.subr.bf16.mxu0 0
        %2241 = vmatpush1.bf16.msra.mxu0 0
        %2242 = vmatprep.subr.bf16.mxu0 0
        %2243 = vmatpush1.bf16.msra.mxu0 0
        %2244 = vmatprep.mubr.bf16.mxu0 0
        %2245 = vmatmul.mubr.bf16.gmra.mrb[0].mxu0 %v2204
        %v2246 = vpop.f32.mrb[0].mxu0
        %v2247 = vadd.f32 0.0, %v2246
        %v2248 = vpop.f32.mrb[0].mxu0
        %v2249 = vpop.f32.mrb[0].mxu0
        %v2250 = vadd.f32 0.0, %v2249
        %v2251 = vpop.f32.mrb[0].mxu0
        %2252 = vmatprep.mubr.bf16.mxu0 0
        %2253 = vmatmul.mubr.bf16.gmra.mrb[0].mxu0 %v2207
        %v2254 = vpop.f32.mrb[0].mxu0
        %v2255 = vadd.f32 0.0, %v2254
        %v2256 = vpop.f32.mrb[0].mxu0
        %v2257 = vpop.f32.mrb[0].mxu0
        %v2258 = vadd.f32 0.0, %v2257
        %v2259 = vpop.f32.mrb[0].mxu0
        %2260 = vdwg.mxu0
        %v2261 = vadd.f32 %v1974, %v2247
        %v2262 = vadd.f32 %v1975, %v2250
        %v2263 = vadd.f32 %v1976, %v2255
        %v2264 = vadd.f32 %v1977, %v2258
        %s2265 = scalar_lea.vmem %s8, 112
        %v2266 = vld [vmem:[%s2265] sm:$0xf]
        %v2267 = vld [vmem:[%s2265 + $0x4] sm:$0xf]
        %v2268 = vld [vmem:[%s2265 + $0x8] sm:$0xf]
        %v2269 = vld [vmem:[%s2265 + $0xc] sm:$0xf]
        %v2274 = vunpack.c.l.b16 %v2266
        %v2275 = vunpack.c.l.b16 %v2267
        %v2276 = vunpack.c.l.b16 %v2268
        %v2277 = vunpack.c.l.b16 %v2269
        %v2278 = vpack.c.b16 %v2275, %v2274
        %v2279 = vpack.c.b16 %v2277, %v2276
        %v2281 = vsel %vm608, %v2278, 0
        %v2284 = vsel %vm608, %v2279, 0
        %v2287 = vand.u32 %v2187, %v618
        %2289 = vmatprep.subr.bf16.mxu0 0
        %2290 = vmatpush1.bf16.msra.mxu0 %v2287
        %2291 = vmatprep.subr.bf16.mxu0 0
        %2292 = vmatpush1.bf16.msra.mxu0 0
        %2293 = vmatprep.subr.bf16.mxu0 0
        %2294 = vmatpush1.bf16.msra.mxu0 0
        %2295 = vmatprep.subr.bf16.mxu0 0
        %2296 = vmatpush1.bf16.msra.mxu0 0
        %2297 = vmatprep.subr.bf16.mxu0 0
        %2298 = vmatpush1.bf16.msra.mxu0 0
        %2299 = vmatprep.subr.bf16.mxu0 0
        %2300 = vmatpush1.bf16.msra.mxu0 0
        %2301 = vmatprep.subr.bf16.mxu0 0
        %2302 = vmatpush1.bf16.msra.mxu0 0
        %2303 = vmatprep.subr.bf16.mxu0 0
        %2304 = vmatpush1.bf16.msra.mxu0 0
        %2305 = vmatprep.subr.bf16.mxu0 0
        %2306 = vmatpush1.bf16.msra.mxu0 0
        %2307 = vmatprep.subr.bf16.mxu0 0
        %2308 = vmatpush1.bf16.msra.mxu0 0
        %2309 = vmatprep.subr.bf16.mxu0 0
        %2310 = vmatpush1.bf16.msra.mxu0 0
        %2311 = vmatprep.subr.bf16.mxu0 0
        %2312 = vmatpush1.bf16.msra.mxu0 0
        %2313 = vmatprep.subr.bf16.mxu0 0
        %2314 = vmatpush1.bf16.msra.mxu0 0
        %2315 = vmatprep.subr.bf16.mxu0 0
        %2316 = vmatpush1.bf16.msra.mxu0 0
        %2317 = vmatprep.subr.bf16.mxu0 0
        %2318 = vmatpush1.bf16.msra.mxu0 0
        %2319 = vmatprep.subr.bf16.mxu0 0
        %2320 = vmatpush1.bf16.msra.mxu0 0
        %2321 = vmatprep.mubr.bf16.mxu0 0
        %2322 = vmatmul.mubr.bf16.gmra.mrb[0].mxu0 %v2281
        %v2323 = vpop.f32.mrb[0].mxu0
        %v2324 = vadd.f32 0.0, %v2323
        %v2325 = vpop.f32.mrb[0].mxu0
        %v2326 = vpop.f32.mrb[0].mxu0
        %v2327 = vadd.f32 0.0, %v2326
        %v2328 = vpop.f32.mrb[0].mxu0
        %2329 = vmatprep.mubr.bf16.mxu0 0
        %2330 = vmatmul.mubr.bf16.gmra.mrb[0].mxu0 %v2284
        %v2331 = vpop.f32.mrb[0].mxu0
        %v2332 = vadd.f32 0.0, %v2331
        %v2333 = vpop.f32.mrb[0].mxu0
        %v2334 = vpop.f32.mrb[0].mxu0
        %v2335 = vadd.f32 0.0, %v2334
        %v2336 = vpop.f32.mrb[0].mxu0
        %2337 = vdwg.mxu0
        %v2338 = vadd.f32 %v2261, %v2324
        %v2339 = vadd.f32 %v2262, %v2327
        %v2340 = vadd.f32 %v2263, %v2332
        %v2341 = vadd.f32 %v2264, %v2335
        %2343 = vset.pattern.permute.xlu0 0
        %2344 = vperm.xlu0 %2343, %v584
        %v2345 = vpop.permute.xlu0 %2344
        %2348 = vset.pattern.permute.xlu0 0
        %2349 = vperm.xlu0 %2348, %v585
        %v2350 = vpop.permute.xlu0 %2349
        %2353 = vset.pattern.permute.xlu0 0
        %2354 = vperm.xlu0 %2353, %v586
        %v2355 = vpop.permute.xlu0 %2354
        %2358 = vset.pattern.permute.xlu0 0
        %2359 = vperm.xlu0 %2358, %v587
        %v2360 = vpop.permute.xlu0 %2359
        %v2362 = vadd.f32 %v2338, %v2345
        %v2363 = vadd.f32 %v2339, %v2350
        %v2364 = vadd.f32 %v2340, %v2355
        %v2365 = vadd.f32 %v2341, %v2360
        %v2366 = vmax.f32 %v2362, 0.0
        %v2367 = vmax.f32 %v2363, 0.0
        %v2368 = vmax.f32 %v2364, 0.0
        %v2369 = vmax.f32 %v2365, 0.0
        %v2370 = vpack.c.bf16 %v2367, %v2366
        %v2371 = vpack.c.bf16 %v2369, %v2368
        %2373 = vset.pattern.permute.xlu0 0
        %2374 = vperm.xlu0 %2373, %v592
        %v2375 = vpop.permute.xlu0 %2374
        %2378 = vset.pattern.permute.xlu0 0
        %2379 = vperm.xlu0 %2378, %v593
        %v2380 = vpop.permute.xlu0 %2379
        %2383 = vset.pattern.permute.xlu0 0
        %2384 = vperm.xlu0 %2383, %v594
        %v2385 = vpop.permute.xlu0 %2384
        %2388 = vset.pattern.permute.xlu0 0
        %2389 = vperm.xlu0 %2388, %v595
        %v2390 = vpop.permute.xlu0 %2389
        %v2396 = vunpack.c.l.b16 %v588
        %v2397 = vunpack.c.l.b16 %v589
        %v2398 = vunpack.c.l.b16 %v590
        %v2399 = vunpack.c.l.b16 %v591
        %v2400 = vpack.c.b16 %v2397, %v2396
        %v2401 = vpack.c.b16 %v2399, %v2398
        %vm2402 = vcmask 261120
        %v2404 = vsel %vm2402, %v2400, 0
        %v2407 = vsel %vm2402, %v2401, 0
        %2409 = vmatprep.subr.bf16.mxu0 0
        %2410 = vmatpush1.bf16.msra.mxu0 %v2370
        %2411 = vmatprep.subr.bf16.mxu0 0
        %2412 = vmatpush1.bf16.msra.mxu0 %v2371
        %2413 = vmatprep.subr.bf16.mxu0 0
        %2414 = vmatpush1.bf16.msra.mxu0 0
        %2415 = vmatprep.subr.bf16.mxu0 0
        %2416 = vmatpush1.bf16.msra.mxu0 0
        %2417 = vmatprep.subr.bf16.mxu0 0
        %2418 = vmatpush1.bf16.msra.mxu0 0
        %2419 = vmatprep.subr.bf16.mxu0 0
        %2420 = vmatpush1.bf16.msra.mxu0 0
        %2421 = vmatprep.subr.bf16.mxu0 0
        %2422 = vmatpush1.bf16.msra.mxu0 0
        %2423 = vmatprep.subr.bf16.mxu0 0
        %2424 = vmatpush1.bf16.msra.mxu0 0
        %2425 = vmatprep.subr.bf16.mxu0 0
        %2426 = vmatpush1.bf16.msra.mxu0 0
        %2427 = vmatprep.subr.bf16.mxu0 0
        %2428 = vmatpush1.bf16.msra.mxu0 0
        %2429 = vmatprep.subr.bf16.mxu0 0
        %2430 = vmatpush1.bf16.msra.mxu0 0
        %2431 = vmatprep.subr.bf16.mxu0 0
        %2432 = vmatpush1.bf16.msra.mxu0 0
        %2433 = vmatprep.subr.bf16.mxu0 0
        %2434 = vmatpush1.bf16.msra.mxu0 0
        %2435 = vmatprep.subr.bf16.mxu0 0
        %2436 = vmatpush1.bf16.msra.mxu0 0
        %2437 = vmatprep.subr.bf16.mxu0 0
        %2438 = vmatpush1.bf16.msra.mxu0 0
        %2439 = vmatprep.subr.bf16.mxu0 0
        %2440 = vmatpush1.bf16.msra.mxu0 0
        %2441 = vmatprep.mubr.bf16.mxu0 0
        %2442 = vmatmul.mubr.bf16.gmra.mrb[0].mxu0 %v2404
        %v2443 = vpop.f32.mrb[0].mxu0
        %v2444 = vadd.f32 %v2375, %v2443
        %v2445 = vpop.f32.mrb[0].mxu0
        %v2446 = vpop.f32.mrb[0].mxu0
        %v2447 = vadd.f32 %v2380, %v2446
        %v2448 = vpop.f32.mrb[0].mxu0
        %2449 = vmatprep.mubr.bf16.mxu0 0
        %2450 = vmatmul.mubr.bf16.gmra.mrb[0].mxu0 %v2407
        %v2451 = vpop.f32.mrb[0].mxu0
        %v2452 = vadd.f32 %v2385, %v2451
        %v2453 = vpop.f32.mrb[0].mxu0
        %v2454 = vpop.f32.mrb[0].mxu0
        %v2455 = vadd.f32 %v2390, %v2454
        %v2456 = vpop.f32.mrb[0].mxu0
        %2457 = vdwg.mxu0
        %v2458 = vmax.f32 %v2444, 0.0
        %v2459 = vmax.f32 %v2447, 0.0
        %v2460 = vmax.f32 %v2452, 0.0
        %v2461 = vmax.f32 %v2455, 0.0
        %v2462 = vpack.c.bf16 %v2459, %v2458
        %v2463 = vpack.c.bf16 %v2461, %v2460
        %2465 = vset.pattern.permute.xlu0 0
        %2466 = vperm.xlu0 %2465, %v597
        %v2467 = vpop.permute.xlu0 %2466
        %v2470 = vsel %vm2402, %v596, 0
        %2472 = vmatprep.subr.bf16.mxu0 0
        %2473 = vmatpush1.bf16.msra.mxu0 %v2462
        %2474 = vmatprep.subr.bf16.mxu0 0
        %2475 = vmatpush1.bf16.msra.mxu0 %v2463
        %2476 = vmatprep.subr.bf16.mxu0 0
        %2477 = vmatpush1.bf16.msra.mxu0 0
        %2478 = vmatprep.subr.bf16.mxu0 0
        %2479 = vmatpush1.bf16.msra.mxu0 0
        %2480 = vmatprep.subr.bf16.mxu0 0
        %2481 = vmatpush1.bf16.msra.mxu0 0
        %2482 = vmatprep.subr.bf16.mxu0 0
        %2483 = vmatpush1.bf16.msra.mxu0 0
        %2484 = vmatprep.subr.bf16.mxu0 0
        %2485 = vmatpush1.bf16.msra.mxu0 0
        %2486 = vmatprep.subr.bf16.mxu0 0
        %2487 = vmatpush1.bf16.msra.mxu0 0
        %2488 = vmatprep.subr.bf16.mxu0 0
        %2489 = vmatpush1.bf16.msra.mxu0 0
        %2490 = vmatprep.subr.bf16.mxu0 0
        %2491 = vmatpush1.bf16.msra.mxu0 0
        %2492 = vmatprep.subr.bf16.mxu0 0
        %2493 = vmatpush1.bf16.msra.mxu0 0
        %2494 = vmatprep.subr.bf16.mxu0 0
        %2495 = vmatpush1.bf16.msra.mxu0 0
        %2496 = vmatprep.subr.bf16.mxu0 0
        %2497 = vmatpush1.bf16.msra.mxu0 0
        %2498 = vmatprep.subr.bf16.mxu0 0
        %2499 = vmatpush1.bf16.msra.mxu0 0
        %2500 = vmatprep.subr.bf16.mxu0 0
        %2501 = vmatpush1.bf16.msra.mxu0 0
        %2502 = vmatprep.subr.bf16.mxu0 0
        %2503 = vmatpush1.bf16.msra.mxu0 0
        %2504 = vmatprep.mubr.bf16.mxu0 0
        %2505 = vmatmul.mubr.bf16.gmra.mrb[0].mxu0 %v2470
        %v2506 = vpop.f32.mrb[0].mxu0
        %v2507 = vadd.f32 %v2467, %v2506
        %v2508 = vpop.f32.mrb[0].mxu0
        %v2509 = vpop.f32.mrb[0].mxu0
        %v2510 = vpop.f32.mrb[0].mxu0
        %2511 = vdwg.mxu0
        %v2512 = vxor.u32 %v2507, 2147483648
        %v2513 = vmul.f32 %v2512, 1.442695
        %v2514 = vpow.pop %v2513
        %v2515 = vadd.f32 %v2514, 1.0
        %v2516 = vrcp.pop %v2515
        %v2517 = vmul.f32 1.0, %v2516
        %2518 = vst [vmem:[%s549] sm:$0x7] %v2517
        %s2519 = sand.u32 %s350, 1
        %s2520 = scalar_lea.sflag [#allocation4], %s2519
        %s2521 = sand.u32 %s350, 1
        %s2522 = smul.addr %s2521, 4
        %s2523 = scalar_lea.vmem [#allocation3], %s2522
        // Predicated region
        $region118: #{tpu_custom_call.1} parent=112 // pred_check
          %p2524 = pneg %p360
        $region119: #{tpu_custom_call.1} parent=112 // pred_check_branch
          %2526 = sbr.rel (%p2524) target = $region121
        $region120: #{tpu_custom_call.1} parent=112 // pred_region
          %s2528 = ssub.s32 64, 64
          %2529 = vsyncadd %s2520, %s2528
          %s2530 = smul.addr %s28, 64
          %s2531 = scalar_lea.hbm %s14, %s2530
          %s2533 = sshll.u32 %s2523, 4
          %s2534 = int_to_ptr.vmem [resolvable:$true] %s2533
          %2536 = dma.vmem_to_hbm [thread:$0]  %s2534, 64, %s2531, %s2520
        $region121: #{tpu_custom_call.1} parent=112 // pred_fallthru
          _
      $region113: #{tpu_custom_call.1} parent=5 // pred_fallthru
        _
      %p2537 = scmp.le.s32.totalorder 2, %s23
      // Predicated region
      $region122: #{tpu_custom_call.1} parent=5 // pred_check
        %p2538 = pneg %p2537
      $region123: #{tpu_custom_call.1} parent=5 // pred_check_branch
        %2540 = sbr.rel (%p2538) target = $region125
      $region124: #{tpu_custom_call.1} parent=5 // pred_region
        %s2541 = ssub.s32 %s23, 2
        // Predicated region
        $region126: #{tpu_custom_call.1} parent=124 // pred_check
          %p2542 = pneg %p366
        $region127: #{tpu_custom_call.1} parent=124 // pred_check_branch
          %2544 = sbr.rel (%p2542) target = $region129
        $region128: #{tpu_custom_call.1} parent=124 // pred_region
          %s2545 = sand.u32 %s351, 1
          %s2546 = scalar_lea.sflag [#allocation4], %s2545
          %s2547 = sand.u32 %s351, 1
          %s2548 = smul.addr %s2547, 4
          %s2549 = scalar_lea.vmem [#allocation3], %s2548
          %2550 = dma.done %s2546, 64
        $region129: #{tpu_custom_call.1} parent=124 // pred_fallthru
          _
      $region125: #{tpu_custom_call.1} parent=5 // pred_fallthru
        _
    $region6: #{tpu_custom_call.1} parent=1 // loop_footer
      %s27 = sadd.s32 1, %s23
    $region7: #{tpu_custom_call.1} parent=1 // loop_footer_branch
      %22 = sbr.rel target = $region3
    $region8: #{tpu_custom_call.1} parent=1 // loop_exit
      _
    %2551 = vsyncpa [#allocation4], 1
    %s2552 = scalar_lea.sflag [#allocation4], 1
    %2553 = vsyncpa %s2552, 1

</llo_original>
